<compile_context>
chip_gen: v5e
topology: v5e:2x2
jax: 0.10.0
libtpu: 0.0.40
codegen_flags: <defaults>
</compile_context>

<pallas_src>
import functools

import jax
import jax.numpy as jnp
from jax import lax
from jax.experimental import pallas as pl
from jax.experimental.pallas import tpu as pltpu

LAMBDA = 10.0
K = 1.0
NEG_SLOPE = 0.2    # leaky-relu slope of the synthetic MLP discriminator
OUT_LANES = 128    # lane-dense partial-sum rows (lanes 0/1/2 used)
OUT_SUBLANES = 8   # keep the per-block output slab (8, 128)-tiled


def _round_up(x, m):
    return (x + m - 1) // m * m


def _pick_block_and_vmem(batch, d, h):
    """VMEM-budget-aware batch tile size + scoped vmem limit."""
    try:
        vmem_cap = int(pltpu.get_tpu_info().vmem_capacity_bytes)
    except Exception:  # not queryable -> be conservative (v7x-sized VMEM)
        vmem_cap = 64 * 1024 * 1024
    budget = min(vmem_cap // 2, 96 * 1024 * 1024)
    resident = 4 * (d * h + h * h + 2 * h)            # W1 + Gram + b1 + w2 (1 buf)
    # per streamed row: real+fake double-buffered (4*D f32) + alpha/out padding
    # + ~10 H-wide f32 temporaries (pre_r/pre_f/h_r/h_f/pre_i/grad_h/gG/...).
    per_row = 4 * (4 * d + 10 * h + 2 * OUT_LANES)
    avail = budget - resident - (2 << 20)             # 2 MiB slack for compiler
    bb = 8 if avail <= 0 else max(8, min(512, avail // per_row))
    bb = (bb // 8) * 8
    if bb >= 256:                                     # feed the 256-wide MXU
        bb = (bb // 256) * 256
    bb = min(bb, _round_up(batch, 8))                 # never bigger than batch
    return int(max(bb, 8)), int(budget)


def _wgangp_kernel(real_ref, fake_ref, alpha_ref, w1_ref, b1_ref, w2_ref,
                   gram_ref, b2_ref, out_ref, *, batch_true, bt, k):
    i = pl.program_id(0)

    real = real_ref[...]                   # (Bt, D) f32 (streamed)
    fake = fake_ref[...]                   # (Bt, D) f32 (streamed)
    alpha = alpha_ref[...]                 # (Bt, 1) f32
    w1 = w1_ref[...]                       # (D, H) f32 (resident)
    b1 = b1_ref[...]                       # (1, H) f32
    w2 = w2_ref[...]                       # (1, H) f32
    gram = gram_ref[...]                   # (H, H) f32 = W1^T W1
    b2 = b2_ref[0, 0]                      # scalar from SMEM

    # Two MXU dots against the same resident RHS -- no concat copy.
    pre_r = jnp.dot(real, w1, preferred_element_type=jnp.float32) + b1
    pre_f = jnp.dot(fake, w1, preferred_element_type=jnp.float32) + b1
    h_r = jnp.where(pre_r > 0, pre_r, NEG_SLOPE * pre_r)
    h_f = jnp.where(pre_f > 0, pre_f, NEG_SLOPE * pre_f)

    # Ragged last block: mask with jnp.where so undefined tail rows never
    # reach the sums (NaN * 0 would poison a multiply-mask).
    row = lax.broadcasted_iota(jnp.int32, (bt, 1), 0) + i * bt
    valid = row < batch_true                                       # (Bt,1) bool
    n_valid = jnp.clip(batch_true - i * bt, 0, bt).astype(jnp.float32)

    # sum_i D(x_i) = sum_{i,j} h[i,j] * w2[j] + b2 * n_valid  (single reduce,
    # no per-row score intermediates / scalar accumulator chains).
    dr_sum = jnp.sum(jnp.where(valid, h_r * w2, 0.0)) + b2 * n_valid
    df_sum = jnp.sum(jnp.where(valid, h_f * w2, 0.0)) + b2 * n_valid

    # First layer is linear, so the interpolate's pre-activation is a VPU mix:
    #   interp @ W1 + b1 == alpha * pre_real + (1 - alpha) * pre_fake
    pre_i = alpha * pre_r + (1.0 - alpha) * pre_f                  # (Bt, H)
    grad_h = jnp.where(pre_i > 0, 1.0, NEG_SLOPE) * w2             # (Bt, H)
    # ||dD/dx||^2 per row = grad_h (W1^T W1) grad_h^T, via the H x H Gram
    # (no (Bt, D) gradient intermediate, H-wide reduce instead of D-wide).
    gG = jnp.dot(grad_h, gram, preferred_element_type=jnp.float32)  # (Bt, H)
    grad_sq = jnp.sum(gG * grad_h, axis=1, keepdims=True)          # (Bt, 1)
    grad_norm = jnp.sqrt(jnp.maximum(grad_sq, 0.0))
    pen = (grad_norm - k) ** 2                                     # (Bt, 1)
    pen_sum = jnp.sum(jnp.where(valid, pen, 0.0))

    # Lane-dense per-block partial sums: sublane 0, lanes 0/1/2 of (8, 128).
    sub = lax.broadcasted_iota(jnp.int32, (OUT_SUBLANES, OUT_LANES), 0)
    lane = lax.broadcasted_iota(jnp.int32, (OUT_SUBLANES, OUT_LANES), 1)
    slab = jnp.zeros((OUT_SUBLANES, OUT_LANES), jnp.float32)
    slab = jnp.where((sub == 0) & (lane == 0), dr_sum, slab)
    slab = jnp.where((sub == 0) & (lane == 1), df_sum, slab)
    slab = jnp.where((sub == 0) & (lane == 2), pen_sum, slab)
    out_ref[...] = slab


def wgangp_loss(real_nchw, fake_nchw, alpha, w1, b1, w2, b2, *, block_b=None):
    """Returns (d_loss, wasserstein_distance) as f32 scalars."""
    B = real_nchw.shape[0]
    real = real_nchw.reshape(B, -1).astype(jnp.float32)
    fake = fake_nchw.reshape(B, -1).astype(jnp.float32)
    D = real.shape[1]
    H = w1.shape[1]

    alpha = alpha.reshape(B, 1).astype(jnp.float32)
    w1 = w1.astype(jnp.float32)
    b1 = b1.reshape(1, H).astype(jnp.float32)
    w2v = w2.reshape(1, H).astype(jnp.float32)
    b2 = jnp.asarray(b2, jnp.float32).reshape(1, 1)
    # H x H Gram of the first layer, computed once, full f32 accuracy.
    gram = jnp.dot(w1.T, w1, precision=lax.Precision.HIGHEST)

    auto_bb, vmem_limit = _pick_block_and_vmem(B, D, H)
    bb = auto_bb if block_b is None else max(8, _round_up(block_b, 8))
    nblk = int(pl.cdiv(B, bb))

    kernel = functools.partial(_wgangp_kernel, batch_true=B, bt=bb, k=K)

    def _call(single_buffer_weights):
        def wspec(shape):
            idx = lambda i: (0,) * len(shape)
            if single_buffer_weights:
                return pl.BlockSpec(shape, idx, pipeline_mode=pl.Buffered(1))
            return pl.BlockSpec(shape, idx)

        return pl.pallas_call(
            kernel,
            out_shape=jax.ShapeDtypeStruct((nblk * OUT_SUBLANES, OUT_LANES),
                                           jnp.float32),
            grid=(nblk,),
            in_specs=[
                pl.BlockSpec((bb, D), lambda i: (i, 0)),   # real (streamed)
                pl.BlockSpec((bb, D), lambda i: (i, 0)),   # fake (streamed)
                pl.BlockSpec((bb, 1), lambda i: (i, 0)),   # alpha
                wspec((D, H)),                             # W1 (resident)
                wspec((1, H)),                             # b1 (resident)
                wspec((1, H)),                             # w2 (resident)
                wspec((H, H)),                             # Gram = W1^T W1
                pl.BlockSpec(memory_space=pltpu.MemorySpace.SMEM),  # b2 scalar
            ],
            out_specs=pl.BlockSpec((OUT_SUBLANES, OUT_LANES), lambda i: (i, 0)),
            compiler_params=pltpu.CompilerParams(
                dimension_semantics=("parallel",),
                vmem_limit_bytes=vmem_limit),
        )(real, fake, alpha, w1, b1, w2v, gram, b2)

    try:
        partials = _call(True)
    except Exception:
        # TODO(synk): drop this fallback once pl.Buffered(1) single-buffering
        # of constant-index resident weights is confirmed on the target build.
        partials = _call(False)

    sums = jnp.sum(partials, axis=0)                 # (128,) lane-wise totals
    inv_b = 1.0 / B
    wd = (sums[0] - sums[1]) * inv_b                 # wasserstein distance
    gp = sums[2] * (LAMBDA * inv_b)                  # gradient penalty
    return gp - wd, wd                               # d_loss = -wd + gp


if __name__ == "__main__":
    key = jax.random.PRNGKey(0)
    k_real, k_fake, k_alpha, k_w1, k_b1, k_w2 = jax.random.split(key, 6)

    B, C, Hs, Ws = 2, 4, 16, 16          # NCHW image inputs
    D = C * Hs * Ws                      # 1024 flattened features
    Hh = 128                             # discriminator hidden width

    real_data = jax.random.normal(k_real, (B, C, Hs, Ws), jnp.float32)
    fake_data = jax.random.normal(k_fake, (B, C, Hs, Ws), jnp.float32)
    # alpha ~ U[0,1) per sample, mirrors torch.rand((batch_size, 1))
    alpha = jax.random.uniform(k_alpha, (B, 1), jnp.float32)

    # Deterministic synthetic discriminator parameters.
    w1 = 0.02 * jax.random.normal(k_w1, (D, Hh), jnp.float32)
    b1 = 0.01 * jax.random.normal(k_b1, (Hh,), jnp.float32)
    w2 = 0.02 * jax.random.normal(k_w2, (Hh,), jnp.float32)
    b2 = jnp.float32(0.0)

    d_loss, wdist = wgangp_loss(real_data, fake_data, alpha, w1, b1, w2, b2)
    jax.block_until_ready((d_loss, wdist))

    # Pure-JAX reference (autodiff gradient) for sanity checking.
    def _ref():
        r = real_data.reshape(B, -1)
        f = fake_data.reshape(B, -1)

        def disc(x):
            pre = x @ w1 + b1
            h = jnp.where(pre > 0, pre, NEG_SLOPE * pre)
            return h @ w2 + b2

        interp = alpha * r + (1 - alpha) * f
        g = jax.vmap(jax.grad(lambda xi: disc(xi[None, :])[0]))(interp)
        gp = jnp.mean((jnp.linalg.norm(g, axis=1) - K) ** 2) * LAMBDA
        wd = disc(r).mean() - disc(f).mean()
        return -wd + gp, wd

    ref_loss, ref_wd = _ref()
    assert jnp.allclose(d_loss, ref_loss, rtol=1e-4, atol=1e-4)
    assert jnp.allclose(wdist, ref_wd, rtol=1e-4, atol=1e-4)
    print("KERNEL_OK")
</pallas_src>

<mosaic_0001>
module attributes {stable_mosaic.version = 11 : i64} {
  func.func @_wgangp_kernel(%arg0: i32, %arg1: memref<8x1024xf32, #tpu.memory_space<vmem>>, %arg2: memref<8x1024xf32, #tpu.memory_space<vmem>>, %arg3: memref<8x1xf32, #tpu.memory_space<vmem>>, %arg4: memref<1024x128xf32, #tpu.memory_space<vmem>>, %arg5: memref<1x128xf32, #tpu.memory_space<vmem>>, %arg6: memref<1x128xf32, #tpu.memory_space<vmem>>, %arg7: memref<128x128xf32, #tpu.memory_space<vmem>>, %arg8: memref<1x1xf32, #tpu.memory_space<smem>>, %arg9: memref<8x128xf32, #tpu.memory_space<vmem>>) attributes {dimension_semantics = [#tpu.dimension_semantics<parallel>], iteration_bounds = array<i64: 1>, scalar_prefetch = 0 : i64, scratch_operands = 0 : i64, tpu.core_type = #tpu.core_type<tc>, window_params = [{transform_indices = @transform_0, window_bounds = array<i64: 8, 1024>}, {transform_indices = @transform_1, window_bounds = array<i64: 8, 1024>}, {transform_indices = @transform_2, window_bounds = array<i64: 8, 1>}, {pipeline_mode = #tpu.pipeline_mode<synchronous>, transform_indices = @transform_3, window_bounds = array<i64: 1024, 128>}, {pipeline_mode = #tpu.pipeline_mode<synchronous>, transform_indices = @transform_4, window_bounds = array<i64: 1, 128>}, {pipeline_mode = #tpu.pipeline_mode<synchronous>, transform_indices = @transform_5, window_bounds = array<i64: 1, 128>}, {pipeline_mode = #tpu.pipeline_mode<synchronous>, transform_indices = @transform_6, window_bounds = array<i64: 128, 128>}, {transform_indices = @transform_7, window_bounds = array<i64: 1, 1>}, {transform_indices = @transform_8, window_bounds = array<i64: 8, 128>}]} {
    %c0 = arith.constant 0 : index
    %c0_0 = arith.constant 0 : index
    %0 = vector.load %arg1[%c0, %c0_0] : memref<8x1024xf32, #tpu.memory_space<vmem>>, vector<8x1024xf32>
    %c0_1 = arith.constant 0 : index
    %c0_2 = arith.constant 0 : index
    %1 = vector.load %arg2[%c0_1, %c0_2] : memref<8x1024xf32, #tpu.memory_space<vmem>>, vector<8x1024xf32>
    %c0_3 = arith.constant 0 : index
    %c0_4 = arith.constant 0 : index
    %2 = vector.load %arg3[%c0_3, %c0_4] : memref<8x1xf32, #tpu.memory_space<vmem>>, vector<8x1xf32>
    %c0_5 = arith.constant 0 : index
    %c0_6 = arith.constant 0 : index
    %3 = vector.load %arg4[%c0_5, %c0_6] : memref<1024x128xf32, #tpu.memory_space<vmem>>, vector<1024x128xf32>
    %c0_7 = arith.constant 0 : index
    %c0_8 = arith.constant 0 : index
    %4 = vector.load %arg5[%c0_7, %c0_8] : memref<1x128xf32, #tpu.memory_space<vmem>>, vector<1x128xf32>
    %c0_9 = arith.constant 0 : index
    %c0_10 = arith.constant 0 : index
    %5 = vector.load %arg6[%c0_9, %c0_10] : memref<1x128xf32, #tpu.memory_space<vmem>>, vector<1x128xf32>
    %c0_11 = arith.constant 0 : index
    %c0_12 = arith.constant 0 : index
    %6 = vector.load %arg7[%c0_11, %c0_12] : memref<128x128xf32, #tpu.memory_space<vmem>>, vector<128x128xf32>
    %c0_13 = arith.constant 0 : index
    %c0_14 = arith.constant 0 : index
    %7 = memref.load %arg8[%c0_13, %c0_14] : memref<1x1xf32, #tpu.memory_space<smem>>
    %cst = arith.constant dense<0.000000e+00> : vector<8x128xf32>
    %8 = tpu.matmul %0, %3, %cst {dimension_numbers = #tpu.dot_dimension_numbers<[1], [0], [0], [1], [0, 0, 1, 1], [], []>} : vector<8x1024xf32>, vector<1024x128xf32>, vector<8x128xf32> -> vector<8x128xf32>
    %9 = vector.broadcast %4 : vector<1x128xf32> to vector<8x128xf32>
    %10 = arith.addf %8, %9 : vector<8x128xf32>
    %cst_15 = arith.constant dense<0.000000e+00> : vector<8x128xf32>
    %11 = tpu.matmul %1, %3, %cst_15 {dimension_numbers = #tpu.dot_dimension_numbers<[1], [0], [0], [1], [0, 0, 1, 1], [], []>} : vector<8x1024xf32>, vector<1024x128xf32>, vector<8x128xf32> -> vector<8x128xf32>
    %12 = vector.broadcast %4 : vector<1x128xf32> to vector<8x128xf32>
    %13 = arith.addf %11, %12 : vector<8x128xf32>
    %cst_16 = arith.constant 0.000000e+00 : f32
    %14 = vector.broadcast %cst_16 : f32 to vector<8x128xf32>
    %15 = arith.cmpf ogt, %10, %14 : vector<8x128xf32>
    %cst_17 = arith.constant 2.000000e-01 : f32
    %16 = vector.broadcast %cst_17 : f32 to vector<8x128xf32>
    %17 = arith.mulf %16, %10 : vector<8x128xf32>
    %18 = arith.select %15, %10, %17 : vector<8x128xi1>, vector<8x128xf32>
    %cst_18 = arith.constant 0.000000e+00 : f32
    %19 = vector.broadcast %cst_18 : f32 to vector<8x128xf32>
    %20 = arith.cmpf ogt, %13, %19 : vector<8x128xf32>
    %cst_19 = arith.constant 2.000000e-01 : f32
    %21 = vector.broadcast %cst_19 : f32 to vector<8x128xf32>
    %22 = arith.mulf %21, %13 : vector<8x128xf32>
    %23 = arith.select %20, %13, %22 : vector<8x128xi1>, vector<8x128xf32>
    %24 = tpu.iota {dimensions = array<i32: 0>} : vector<8x1xi32>
    %c8_i32 = arith.constant 8 : i32
    %25 = arith.muli %arg0, %c8_i32 : i32
    %26 = vector.broadcast %25 : i32 to vector<8x1xi32>
    %27 = arith.addi %24, %26 : vector<8x1xi32>
    %c2_i32 = arith.constant 2 : i32
    %28 = vector.broadcast %c2_i32 : i32 to vector<8x1xi32>
    %29 = arith.cmpi slt, %27, %28 : vector<8x1xi32>
    %c8_i32_20 = arith.constant 8 : i32
    %30 = arith.muli %arg0, %c8_i32_20 : i32
    %c2_i32_21 = arith.constant 2 : i32
    %31 = arith.subi %c2_i32_21, %30 : i32
    %c0_i32 = arith.constant 0 : i32
    %c8_i32_22 = arith.constant 8 : i32
    %32 = arith.maxsi %c0_i32, %31 : i32
    %33 = arith.minsi %c8_i32_22, %32 : i32
    %34 = arith.sitofp %33 : i32 to f32
    %35 = vector.broadcast %5 : vector<1x128xf32> to vector<8x128xf32>
    %36 = arith.mulf %18, %35 : vector<8x128xf32>
    %cst_23 = arith.constant 0.000000e+00 : f32
    %37 = vector.shape_cast %29 : vector<8x1xi1> to vector<8x1xi1>
    %38 = vector.broadcast %37 : vector<8x1xi1> to vector<8x128xi1>
    %39 = vector.broadcast %cst_23 : f32 to vector<8x128xf32>
    %40 = arith.select %38, %36, %39 : vector<8x128xi1>, vector<8x128xf32>
    %41 = vector.shape_cast %40 : vector<8x128xf32> to vector<1x8x128xf32>
    %cst_24 = arith.constant dense<0.000000e+00> : vector<1xf32>
    %42 = vector.multi_reduction <add>, %41, %cst_24 [1, 2] : vector<1x8x128xf32> to vector<1xf32>
    %43 = vector.shape_cast %42 : vector<1xf32> to vector<1x1x1xf32>
    %44 = vector.extract %43[0, 0, 0] : f32 from vector<1x1x1xf32>
    %45 = arith.mulf %7, %34 : f32
    %46 = arith.addf %44, %45 : f32
    %47 = vector.broadcast %5 : vector<1x128xf32> to vector<8x128xf32>
    %48 = arith.mulf %23, %47 : vector<8x128xf32>
    %cst_25 = arith.constant 0.000000e+00 : f32
    %49 = vector.shape_cast %29 : vector<8x1xi1> to vector<8x1xi1>
    %50 = vector.broadcast %49 : vector<8x1xi1> to vector<8x128xi1>
    %51 = vector.broadcast %cst_25 : f32 to vector<8x128xf32>
    %52 = arith.select %50, %48, %51 : vector<8x128xi1>, vector<8x128xf32>
    %53 = vector.shape_cast %52 : vector<8x128xf32> to vector<1x8x128xf32>
    %cst_26 = arith.constant dense<0.000000e+00> : vector<1xf32>
    %54 = vector.multi_reduction <add>, %53, %cst_26 [1, 2] : vector<1x8x128xf32> to vector<1xf32>
    %55 = vector.shape_cast %54 : vector<1xf32> to vector<1x1x1xf32>
    %56 = vector.extract %55[0, 0, 0] : f32 from vector<1x1x1xf32>
    %57 = arith.mulf %7, %34 : f32
    %58 = arith.addf %56, %57 : f32
    %59 = vector.broadcast %2 : vector<8x1xf32> to vector<8x128xf32>
    %60 = arith.mulf %59, %10 : vector<8x128xf32>
    %cst_27 = arith.constant 1.000000e+00 : f32
    %61 = vector.broadcast %cst_27 : f32 to vector<8x1xf32>
    %62 = arith.subf %61, %2 : vector<8x1xf32>
    %63 = vector.broadcast %62 : vector<8x1xf32> to vector<8x128xf32>
    %64 = arith.mulf %63, %13 : vector<8x128xf32>
    %65 = arith.addf %60, %64 : vector<8x128xf32>
    %cst_28 = arith.constant 0.000000e+00 : f32
    %66 = vector.broadcast %cst_28 : f32 to vector<8x128xf32>
    %67 = arith.cmpf ogt, %65, %66 : vector<8x128xf32>
    %cst_29 = arith.constant 1.000000e+00 : f32
    %cst_30 = arith.constant 2.000000e-01 : f32
    %68 = vector.broadcast %cst_29 : f32 to vector<8x128xf32>
    %69 = vector.broadcast %cst_30 : f32 to vector<8x128xf32>
    %70 = arith.select %67, %68, %69 : vector<8x128xi1>, vector<8x128xf32>
    %71 = vector.broadcast %5 : vector<1x128xf32> to vector<8x128xf32>
    %72 = arith.mulf %70, %71 : vector<8x128xf32>
    %cst_31 = arith.constant dense<0.000000e+00> : vector<8x128xf32>
    %73 = tpu.matmul %72, %6, %cst_31 {dimension_numbers = #tpu.dot_dimension_numbers<[1], [0], [0], [1], [0, 0, 1, 1], [], []>} : vector<8x128xf32>, vector<128x128xf32>, vector<8x128xf32> -> vector<8x128xf32>
    %74 = arith.mulf %73, %72 : vector<8x128xf32>
    %cst_32 = arith.constant dense<0.000000e+00> : vector<8xf32>
    %75 = vector.multi_reduction <add>, %74, %cst_32 [1] : vector<8x128xf32> to vector<8xf32>
    %76 = vector.shape_cast %75 : vector<8xf32> to vector<8x1xf32>
    %cst_33 = arith.constant 0.000000e+00 : f32
    %77 = vector.broadcast %cst_33 : f32 to vector<8x1xf32>
    %78 = arith.maximumf %76, %77 : vector<8x1xf32>
    %79 = math.sqrt %78 : vector<8x1xf32>
    %cst_34 = arith.constant 1.000000e+00 : f32
    %80 = vector.broadcast %cst_34 : f32 to vector<8x1xf32>
    %81 = arith.subf %79, %80 : vector<8x1xf32>
    %82 = arith.mulf %81, %81 : vector<8x1xf32>
    %cst_35 = arith.constant 0.000000e+00 : f32
    %83 = vector.broadcast %cst_35 : f32 to vector<8x1xf32>
    %84 = arith.select %29, %82, %83 : vector<8x1xi1>, vector<8x1xf32>
    %85 = vector.shape_cast %84 : vector<8x1xf32> to vector<1x8x1xf32>
    %cst_36 = arith.constant dense<0.000000e+00> : vector<1xf32>
    %86 = vector.multi_reduction <add>, %85, %cst_36 [1, 2] : vector<1x8x1xf32> to vector<1xf32>
    %87 = vector.shape_cast %86 : vector<1xf32> to vector<1x1x1xf32>
    %88 = vector.extract %87[0, 0, 0] : f32 from vector<1x1x1xf32>
    %89 = tpu.iota {dimensions = array<i32: 0>} : vector<8x128xi32>
    %90 = tpu.iota {dimensions = array<i32: 1>} : vector<8x128xi32>
    %cst_37 = arith.constant 0.000000e+00 : f32
    %91 = vector.broadcast %cst_37 : f32 to vector<8x128xf32>
    %c0_i32_38 = arith.constant 0 : i32
    %92 = vector.broadcast %c0_i32_38 : i32 to vector<8x128xi32>
    %93 = arith.cmpi eq, %89, %92 : vector<8x128xi32>
    %c0_i32_39 = arith.constant 0 : i32
    %94 = vector.broadcast %c0_i32_39 : i32 to vector<8x128xi32>
    %95 = arith.cmpi eq, %90, %94 : vector<8x128xi32>
    %96 = arith.andi %93, %95 : vector<8x128xi1>
    %97 = vector.broadcast %46 : f32 to vector<8x128xf32>
    %98 = arith.select %96, %97, %91 : vector<8x128xi1>, vector<8x128xf32>
    %c0_i32_40 = arith.constant 0 : i32
    %99 = vector.broadcast %c0_i32_40 : i32 to vector<8x128xi32>
    %100 = arith.cmpi eq, %89, %99 : vector<8x128xi32>
    %c1_i32 = arith.constant 1 : i32
    %101 = vector.broadcast %c1_i32 : i32 to vector<8x128xi32>
    %102 = arith.cmpi eq, %90, %101 : vector<8x128xi32>
    %103 = arith.andi %100, %102 : vector<8x128xi1>
    %104 = vector.broadcast %58 : f32 to vector<8x128xf32>
    %105 = arith.select %103, %104, %98 : vector<8x128xi1>, vector<8x128xf32>
    %c0_i32_41 = arith.constant 0 : i32
    %106 = vector.broadcast %c0_i32_41 : i32 to vector<8x128xi32>
    %107 = arith.cmpi eq, %89, %106 : vector<8x128xi32>
    %c2_i32_42 = arith.constant 2 : i32
    %108 = vector.broadcast %c2_i32_42 : i32 to vector<8x128xi32>
    %109 = arith.cmpi eq, %90, %108 : vector<8x128xi32>
    %110 = arith.andi %107, %109 : vector<8x128xi1>
    %111 = vector.broadcast %88 : f32 to vector<8x128xf32>
    %112 = arith.select %110, %111, %105 : vector<8x128xi1>, vector<8x128xf32>
    %c0_43 = arith.constant 0 : index
    %c0_44 = arith.constant 0 : index
    %113 = vector.load %arg9[%c0_43, %c0_44] : memref<8x128xf32, #tpu.memory_space<vmem>>, vector<8x128xf32>
    tpu.vector_store %arg9[%c0_43, %c0_44], %112 {strides = array<i32>} : memref<8x128xf32, #tpu.memory_space<vmem>>, vector<8x128xf32>,
    return
  }
  func.func @transform_0(%arg0: i32) -> (i32, i32) {
    %c0_i32 = arith.constant 0 : i32
    %c0_i32_0 = arith.constant 0 : i32
    return %arg0, %c0_i32 : i32, i32
  }
  func.func @transform_1(%arg0: i32) -> (i32, i32) {
    %c0_i32 = arith.constant 0 : i32
    %c0_i32_0 = arith.constant 0 : i32
    return %arg0, %c0_i32 : i32, i32
  }
  func.func @transform_2(%arg0: i32) -> (i32, i32) {
    %c0_i32 = arith.constant 0 : i32
    %c0_i32_0 = arith.constant 0 : i32
    return %arg0, %c0_i32 : i32, i32
  }
  func.func @transform_3(%arg0: i32) -> (i32, i32) {
    %c0_i32 = arith.constant 0 : i32
    %c0_i32_0 = arith.constant 0 : i32
    %c0_i32_1 = arith.constant 0 : i32
    return %c0_i32, %c0_i32_0 : i32, i32
  }
  func.func @transform_4(%arg0: i32) -> (i32, i32) {
    %c0_i32 = arith.constant 0 : i32
    %c0_i32_0 = arith.constant 0 : i32
    %c0_i32_1 = arith.constant 0 : i32
    return %c0_i32, %c0_i32_0 : i32, i32
  }
  func.func @transform_5(%arg0: i32) -> (i32, i32) {
    %c0_i32 = arith.constant 0 : i32
    %c0_i32_0 = arith.constant 0 : i32
    %c0_i32_1 = arith.constant 0 : i32
    return %c0_i32, %c0_i32_0 : i32, i32
  }
  func.func @transform_6(%arg0: i32) -> (i32, i32) {
    %c0_i32 = arith.constant 0 : i32
    %c0_i32_0 = arith.constant 0 : i32
    %c0_i32_1 = arith.constant 0 : i32
    return %c0_i32, %c0_i32_0 : i32, i32
  }
  func.func @transform_7(%arg0: i32) -> (i32, i32) {
    %c0_i32 = arith.constant 0 : i32
    %c0_i32_0 = arith.constant 0 : i32
    %c0_i32_1 = arith.constant 0 : i32
    return %c0_i32, %c0_i32_0 : i32, i32
  }
  func.func @transform_8(%arg0: i32) -> (i32, i32) {
    %c0_i32 = arith.constant 0 : i32
    %c0_i32_0 = arith.constant 0 : i32
    return %arg0, %c0_i32 : i32, i32
  }
}

module attributes {stable_mosaic.version = 11 : i64} {
  func.func @_wgangp_kernel(%arg0: i32, %arg1: memref<8x1024xf32, #tpu.memory_space<vmem>>, %arg2: memref<8x1024xf32, #tpu.memory_space<vmem>>, %arg3: memref<8x1xf32, #tpu.memory_space<vmem>>, %arg4: memref<1024x128xf32, #tpu.memory_space<vmem>>, %arg5: memref<1x128xf32, #tpu.memory_space<vmem>>, %arg6: memref<1x128xf32, #tpu.memory_space<vmem>>, %arg7: memref<128x128xf32, #tpu.memory_space<vmem>>, %arg8: memref<1x1xf32, #tpu.memory_space<smem>>, %arg9: memref<8x128xf32, #tpu.memory_space<vmem>>) attributes {dimension_semantics = [#tpu.dimension_semantics<parallel>], iteration_bounds = array<i64: 1>, scalar_prefetch = 0 : i64, scratch_operands = 0 : i64, tpu.core_type = #tpu.core_type<tc>, window_params = [{transform_indices = @transform_0, window_bounds = array<i64: 8, 1024>}, {transform_indices = @transform_1, window_bounds = array<i64: 8, 1024>}, {transform_indices = @transform_2, window_bounds = array<i64: 8, 1>}, {pipeline_mode = #tpu.pipeline_mode<synchronous>, transform_indices = @transform_3, window_bounds = array<i64: 1024, 128>}, {pipeline_mode = #tpu.pipeline_mode<synchronous>, transform_indices = @transform_4, window_bounds = array<i64: 1, 128>}, {pipeline_mode = #tpu.pipeline_mode<synchronous>, transform_indices = @transform_5, window_bounds = array<i64: 1, 128>}, {pipeline_mode = #tpu.pipeline_mode<synchronous>, transform_indices = @transform_6, window_bounds = array<i64: 128, 128>}, {transform_indices = @transform_7, window_bounds = array<i64: 1, 1>}, {transform_indices = @transform_8, window_bounds = array<i64: 8, 128>}]} {
    %c0 = arith.constant 0 : index
    %c0_0 = arith.constant 0 : index
    %0 = vector.load %arg1[%c0, %c0_0] : memref<8x1024xf32, #tpu.memory_space<vmem>>, vector<8x1024xf32>
    %c0_1 = arith.constant 0 : index
    %c0_2 = arith.constant 0 : index
    %1 = vector.load %arg2[%c0_1, %c0_2] : memref<8x1024xf32, #tpu.memory_space<vmem>>, vector<8x1024xf32>
    %c0_3 = arith.constant 0 : index
    %c0_4 = arith.constant 0 : index
    %2 = vector.load %arg3[%c0_3, %c0_4] : memref<8x1xf32, #tpu.memory_space<vmem>>, vector<8x1xf32>
    %c0_5 = arith.constant 0 : index
    %c0_6 = arith.constant 0 : index
    %3 = vector.load %arg4[%c0_5, %c0_6] : memref<1024x128xf32, #tpu.memory_space<vmem>>, vector<1024x128xf32>
    %c0_7 = arith.constant 0 : index
    %c0_8 = arith.constant 0 : index
    %4 = vector.load %arg5[%c0_7, %c0_8] : memref<1x128xf32, #tpu.memory_space<vmem>>, vector<1x128xf32>
    %c0_9 = arith.constant 0 : index
    %c0_10 = arith.constant 0 : index
    %5 = vector.load %arg6[%c0_9, %c0_10] : memref<1x128xf32, #tpu.memory_space<vmem>>, vector<1x128xf32>
    %c0_11 = arith.constant 0 : index
    %c0_12 = arith.constant 0 : index
    %6 = vector.load %arg7[%c0_11, %c0_12] : memref<128x128xf32, #tpu.memory_space<vmem>>, vector<128x128xf32>
    %c0_13 = arith.constant 0 : index
    %c0_14 = arith.constant 0 : index
    %7 = memref.load %arg8[%c0_13, %c0_14] : memref<1x1xf32, #tpu.memory_space<smem>>
    %cst = arith.constant dense<0.000000e+00> : vector<8x128xf32>
    %8 = tpu.matmul %0, %3, %cst {dimension_numbers = #tpu.dot_dimension_numbers<[1], [0], [0], [1], [0, 0, 1, 1], [], []>} : vector<8x1024xf32>, vector<1024x128xf32>, vector<8x128xf32> -> vector<8x128xf32>
    %9 = vector.broadcast %4 : vector<1x128xf32> to vector<8x128xf32>
    %10 = arith.addf %8, %9 : vector<8x128xf32>
    %cst_15 = arith.constant dense<0.000000e+00> : vector<8x128xf32>
    %11 = tpu.matmul %1, %3, %cst_15 {dimension_numbers = #tpu.dot_dimension_numbers<[1], [0], [0], [1], [0, 0, 1, 1], [], []>} : vector<8x1024xf32>, vector<1024x128xf32>, vector<8x128xf32> -> vector<8x128xf32>
    %12 = vector.broadcast %4 : vector<1x128xf32> to vector<8x128xf32>
    %13 = arith.addf %11, %12 : vector<8x128xf32>
    %cst_16 = arith.constant 0.000000e+00 : f32
    %14 = vector.broadcast %cst_16 : f32 to vector<8x128xf32>
    %15 = arith.cmpf ogt, %10, %14 : vector<8x128xf32>
    %cst_17 = arith.constant 2.000000e-01 : f32
    %16 = vector.broadcast %cst_17 : f32 to vector<8x128xf32>
    %17 = arith.mulf %16, %10 : vector<8x128xf32>
    %18 = arith.select %15, %10, %17 : vector<8x128xi1>, vector<8x128xf32>
    %cst_18 = arith.constant 0.000000e+00 : f32
    %19 = vector.broadcast %cst_18 : f32 to vector<8x128xf32>
    %20 = arith.cmpf ogt, %13, %19 : vector<8x128xf32>
    %cst_19 = arith.constant 2.000000e-01 : f32
    %21 = vector.broadcast %cst_19 : f32 to vector<8x128xf32>
    %22 = arith.mulf %21, %13 : vector<8x128xf32>
    %23 = arith.select %20, %13, %22 : vector<8x128xi1>, vector<8x128xf32>
    %24 = tpu.iota {dimensions = array<i32: 0>} : vector<8x1xi32>
    %c8_i32 = arith.constant 8 : i32
    %25 = arith.muli %arg0, %c8_i32 : i32
    %26 = vector.broadcast %25 : i32 to vector<8x1xi32>
    %27 = arith.addi %24, %26 : vector<8x1xi32>
    %c2_i32 = arith.constant 2 : i32
    %28 = vector.broadcast %c2_i32 : i32 to vector<8x1xi32>
    %29 = arith.cmpi slt, %27, %28 : vector<8x1xi32>
    %c8_i32_20 = arith.constant 8 : i32
    %30 = arith.muli %arg0, %c8_i32_20 : i32
    %c2_i32_21 = arith.constant 2 : i32
    %31 = arith.subi %c2_i32_21, %30 : i32
    %c0_i32 = arith.constant 0 : i32
    %c8_i32_22 = arith.constant 8 : i32
    %32 = arith.maxsi %c0_i32, %31 : i32
    %33 = arith.minsi %c8_i32_22, %32 : i32
    %34 = arith.sitofp %33 : i32 to f32
    %35 = vector.broadcast %5 : vector<1x128xf32> to vector<8x128xf32>
    %36 = arith.mulf %18, %35 : vector<8x128xf32>
    %cst_23 = arith.constant 0.000000e+00 : f32
    %37 = vector.shape_cast %29 : vector<8x1xi1> to vector<8x1xi1>
    %38 = vector.broadcast %37 : vector<8x1xi1> to vector<8x128xi1>
    %39 = vector.broadcast %cst_23 : f32 to vector<8x128xf32>
    %40 = arith.select %38, %36, %39 : vector<8x128xi1>, vector<8x128xf32>
    %41 = vector.shape_cast %40 : vector<8x128xf32> to vector<1x8x128xf32>
    %cst_24 = arith.constant dense<0.000000e+00> : vector<1xf32>
    %42 = vector.multi_reduction <add>, %41, %cst_24 [1, 2] : vector<1x8x128xf32> to vector<1xf32>
    %43 = vector.shape_cast %42 : vector<1xf32> to vector<1x1x1xf32>
    %44 = vector.extract %43[0, 0, 0] : f32 from vector<1x1x1xf32>
    %45 = arith.mulf %7, %34 : f32
    %46 = arith.addf %44, %45 : f32
    %47 = vector.broadcast %5 : vector<1x128xf32> to vector<8x128xf32>
    %48 = arith.mulf %23, %47 : vector<8x128xf32>
    %cst_25 = arith.constant 0.000000e+00 : f32
    %49 = vector.shape_cast %29 : vector<8x1xi1> to vector<8x1xi1>
    %50 = vector.broadcast %49 : vector<8x1xi1> to vector<8x128xi1>
    %51 = vector.broadcast %cst_25 : f32 to vector<8x128xf32>
    %52 = arith.select %50, %48, %51 : vector<8x128xi1>, vector<8x128xf32>
    %53 = vector.shape_cast %52 : vector<8x128xf32> to vector<1x8x128xf32>
    %cst_26 = arith.constant dense<0.000000e+00> : vector<1xf32>
    %54 = vector.multi_reduction <add>, %53, %cst_26 [1, 2] : vector<1x8x128xf32> to vector<1xf32>
    %55 = vector.shape_cast %54 : vector<1xf32> to vector<1x1x1xf32>
    %56 = vector.extract %55[0, 0, 0] : f32 from vector<1x1x1xf32>
    %57 = arith.mulf %7, %34 : f32
    %58 = arith.addf %56, %57 : f32
    %59 = vector.broadcast %2 : vector<8x1xf32> to vector<8x128xf32>
    %60 = arith.mulf %59, %10 : vector<8x128xf32>
    %cst_27 = arith.constant 1.000000e+00 : f32
    %61 = vector.broadcast %cst_27 : f32 to vector<8x1xf32>
    %62 = arith.subf %61, %2 : vector<8x1xf32>
    %63 = vector.broadcast %62 : vector<8x1xf32> to vector<8x128xf32>
    %64 = arith.mulf %63, %13 : vector<8x128xf32>
    %65 = arith.addf %60, %64 : vector<8x128xf32>
    %cst_28 = arith.constant 0.000000e+00 : f32
    %66 = vector.broadcast %cst_28 : f32 to vector<8x128xf32>
    %67 = arith.cmpf ogt, %65, %66 : vector<8x128xf32>
    %cst_29 = arith.constant 1.000000e+00 : f32
    %cst_30 = arith.constant 2.000000e-01 : f32
    %68 = vector.broadcast %cst_29 : f32 to vector<8x128xf32>
    %69 = vector.broadcast %cst_30 : f32 to vector<8x128xf32>
    %70 = arith.select %67, %68, %69 : vector<8x128xi1>, vector<8x128xf32>
    %71 = vector.broadcast %5 : vector<1x128xf32> to vector<8x128xf32>
    %72 = arith.mulf %70, %71 : vector<8x128xf32>
    %cst_31 = arith.constant dense<0.000000e+00> : vector<8x128xf32>
    %73 = tpu.matmul %72, %6, %cst_31 {dimension_numbers = #tpu.dot_dimension_numbers<[1], [0], [0], [1], [0, 0, 1, 1], [], []>} : vector<8x128xf32>, vector<128x128xf32>, vector<8x128xf32> -> vector<8x128xf32>
    %74 = arith.mulf %73, %72 : vector<8x128xf32>
    %cst_32 = arith.constant dense<0.000000e+00> : vector<8xf32>
    %75 = vector.multi_reduction <add>, %74, %cst_32 [1] : vector<8x128xf32> to vector<8xf32>
    %76 = vector.shape_cast %75 : vector<8xf32> to vector<8x1xf32>
    %cst_33 = arith.constant 0.000000e+00 : f32
    %77 = vector.broadcast %cst_33 : f32 to vector<8x1xf32>
    %78 = arith.maximumf %76, %77 : vector<8x1xf32>
    %79 = math.sqrt %78 : vector<8x1xf32>
    %cst_34 = arith.constant 1.000000e+00 : f32
    %80 = vector.broadcast %cst_34 : f32 to vector<8x1xf32>
    %81 = arith.subf %79, %80 : vector<8x1xf32>
    %82 = arith.mulf %81, %81 : vector<8x1xf32>
    %cst_35 = arith.constant 0.000000e+00 : f32
    %83 = vector.broadcast %cst_35 : f32 to vector<8x1xf32>
    %84 = arith.select %29, %82, %83 : vector<8x1xi1>, vector<8x1xf32>
    %85 = vector.shape_cast %84 : vector<8x1xf32> to vector<1x8x1xf32>
    %cst_36 = arith.constant dense<0.000000e+00> : vector<1xf32>
    %86 = vector.multi_reduction <add>, %85, %cst_36 [1, 2] : vector<1x8x1xf32> to vector<1xf32>
    %87 = vector.shape_cast %86 : vector<1xf32> to vector<1x1x1xf32>
    %88 = vector.extract %87[0, 0, 0] : f32 from vector<1x1x1xf32>
    %89 = tpu.iota {dimensions = array<i32: 0>} : vector<8x128xi32>
    %90 = tpu.iota {dimensions = array<i32: 1>} : vector<8x128xi32>
    %cst_37 = arith.constant 0.000000e+00 : f32
    %91 = vector.broadcast %cst_37 : f32 to vector<8x128xf32>
    %c0_i32_38 = arith.constant 0 : i32
    %92 = vector.broadcast %c0_i32_38 : i32 to vector<8x128xi32>
    %93 = arith.cmpi eq, %89, %92 : vector<8x128xi32>
    %c0_i32_39 = arith.constant 0 : i32
    %94 = vector.broadcast %c0_i32_39 : i32 to vector<8x128xi32>
    %95 = arith.cmpi eq, %90, %94 : vector<8x128xi32>
    %96 = arith.andi %93, %95 : vector<8x128xi1>
    %97 = vector.broadcast %46 : f32 to vector<8x128xf32>
    %98 = arith.select %96, %97, %91 : vector<8x128xi1>, vector<8x128xf32>
    %c0_i32_40 = arith.constant 0 : i32
    %99 = vector.broadcast %c0_i32_40 : i32 to vector<8x128xi32>
    %100 = arith.cmpi eq, %89, %99 : vector<8x128xi32>
    %c1_i32 = arith.constant 1 : i32
    %101 = vector.broadcast %c1_i32 : i32 to vector<8x128xi32>
    %102 = arith.cmpi eq, %90, %101 : vector<8x128xi32>
    %103 = arith.andi %100, %102 : vector<8x128xi1>
    %104 = vector.broadcast %58 : f32 to vector<8x128xf32>
    %105 = arith.select %103, %104, %98 : vector<8x128xi1>, vector<8x128xf32>
    %c0_i32_41 = arith.constant 0 : i32
    %106 = vector.broadcast %c0_i32_41 : i32 to vector<8x128xi32>
    %107 = arith.cmpi eq, %89, %106 : vector<8x128xi32>
    %c2_i32_42 = arith.constant 2 : i32
    %108 = vector.broadcast %c2_i32_42 : i32 to vector<8x128xi32>
    %109 = arith.cmpi eq, %90, %108 : vector<8x128xi32>
    %110 = arith.andi %107, %109 : vector<8x128xi1>
    %111 = vector.broadcast %88 : f32 to vector<8x128xf32>
    %112 = arith.select %110, %111, %105 : vector<8x128xi1>, vector<8x128xf32>
    %c0_43 = arith.constant 0 : index
    %c0_44 = arith.constant 0 : index
    %113 = vector.load %arg9[%c0_43, %c0_44] : memref<8x128xf32, #tpu.memory_space<vmem>>, vector<8x128xf32>
    tpu.vector_store %arg9[%c0_43, %c0_44], %112 {strides = array<i32>} : memref<8x128xf32, #tpu.memory_space<vmem>>, vector<8x128xf32>,
    return
  }
  func.func @transform_0(%arg0: i32) -> (i32, i32) {
    %c0_i32 = arith.constant 0 : i32
    %c0_i32_0 = arith.constant 0 : i32
    return %arg0, %c0_i32 : i32, i32
  }
  func.func @transform_1(%arg0: i32) -> (i32, i32) {
    %c0_i32 = arith.constant 0 : i32
    %c0_i32_0 = arith.constant 0 : i32
    return %arg0, %c0_i32 : i32, i32
  }
  func.func @transform_2(%arg0: i32) -> (i32, i32) {
    %c0_i32 = arith.constant 0 : i32
    %c0_i32_0 = arith.constant 0 : i32
    return %arg0, %c0_i32 : i32, i32
  }
  func.func @transform_3(%arg0: i32) -> (i32, i32) {
    %c0_i32 = arith.constant 0 : i32
    %c0_i32_0 = arith.constant 0 : i32
    %c0_i32_1 = arith.constant 0 : i32
    return %c0_i32, %c0_i32_0 : i32, i32
  }
  func.func @transform_4(%arg0: i32) -> (i32, i32) {
    %c0_i32 = arith.constant 0 : i32
    %c0_i32_0 = arith.constant 0 : i32
    %c0_i32_1 = arith.constant 0 : i32
    return %c0_i32, %c0_i32_0 : i32, i32
  }
  func.func @transform_5(%arg0: i32) -> (i32, i32) {
    %c0_i32 = arith.constant 0 : i32
    %c0_i32_0 = arith.constant 0 : i32
    %c0_i32_1 = arith.constant 0 : i32
    return %c0_i32, %c0_i32_0 : i32, i32
  }
  func.func @transform_6(%arg0: i32) -> (i32, i32) {
    %c0_i32 = arith.constant 0 : i32
    %c0_i32_0 = arith.constant 0 : i32
    %c0_i32_1 = arith.constant 0 : i32
    return %c0_i32, %c0_i32_0 : i32, i32
  }
  func.func @transform_7(%arg0: i32) -> (i32, i32) {
    %c0_i32 = arith.constant 0 : i32
    %c0_i32_0 = arith.constant 0 : i32
    %c0_i32_1 = arith.constant 0 : i32
    return %c0_i32, %c0_i32_0 : i32, i32
  }
  func.func @transform_8(%arg0: i32) -> (i32, i32) {
    %c0_i32 = arith.constant 0 : i32
    %c0_i32_0 = arith.constant 0 : i32
    return %arg0, %c0_i32 : i32, i32
  }
}

</mosaic_0001>

<llo_original>
// kernel: tpu_custom_call.1
$region0: #{tpu_custom_call.1}
  #allocation0 [shape = 'u32[]', space=smem, size = 0x4, offset = 0x4, fixed_abs, tag = 'smem constant byte address 0x4 - core index']
  #allocation1 [shape = 'u32[72,128]{1,0:T(1,128)}', space=vmem, size = 0x9000, scoped, tag = 'internal scratch']
  #allocation2 [shape = 'f32[1,1]{1,0:T(1,128)S(6)}', space=smem, size = 0x200, scoped, tag = 'scoped memory for tpu_custom_call.1']
  %s0 = inlined_call_operand.hbm [shape: f32[2,1024], index: 0, kind: input, shape index: {}]
  %s1 = inlined_call_operand.hbm [shape: f32[2,1024], index: 1, kind: input, shape index: {}]
  %s2 = inlined_call_operand.vmem [shape: f32[2,1], index: 2, kind: input, shape index: {}]
  %s3 = inlined_call_operand.hbm [shape: f32[1024,128], index: 3, kind: input, shape index: {}]
  %s4 = inlined_call_operand.vmem [shape: f32[1,128], index: 4, kind: input, shape index: {}]
  %s5 = inlined_call_operand.vmem [shape: f32[1,128], index: 5, kind: input, shape index: {}]
  %s6 = inlined_call_operand.hbm [shape: f32[128,128], index: 6, kind: input, shape index: {}]
  %s7 = inlined_call_operand.<no memory space> [shape: f32[1,1], index: 7, kind: input, shape index: {}]
  %s8 = inlined_call_operand.hbm [shape: f32[8,128], index: 8, kind: output, shape index: {}]
  %s9 = sld [smem:[#allocation0]]
  $region58: #{tpu_custom_call.1} parent=0
    _
  %s11 = ssub.s32 1, %s9
  %s12 = scalar_select 0, %s11, %s9
  %13 = sst [smem:[#allocation2]] %s7
  $region1: #{tpu_custom_call.1} parent=0
    #allocation3 [shape = 'u8[32768]{0}', space=vmem, size = 0x8000, scoped, tag = 'input window, operand 0, single buffered']
    #allocation4 [shape = 's32[1]{0}', space=sflag, size = 0x4, scoped, tag = 'scoped memory for tpu_custom_call.1']
    #allocation5 [shape = 's32[1]{0}', space=sflag, size = 0x4, scoped, tag = 'scoped memory for tpu_custom_call.1']
    #allocation6 [shape = 'u8[32768]{0}', space=vmem, size = 0x8000, scoped, tag = 'input window, operand 1, single buffered']
    #allocation7 [shape = 's32[1]{0}', space=sflag, size = 0x4, scoped, tag = 'scoped memory for tpu_custom_call.1']
    #allocation8 [shape = 'u8[524288]{0}', space=vmem, size = 0x80000, scoped, tag = 'input window, operand 3, single buffered']
    #allocation9 [shape = 'u8[65536]{0}', space=vmem, size = 0x10000, scoped, tag = 'input window, operand 6, single buffered']
    #allocation10 [shape = 's32[1]{0}', space=sflag, size = 0x4, scoped, tag = 'scoped memory for tpu_custom_call.1']
    #allocation11 [shape = 'u8[4096]{0}', space=vmem, size = 0x1000, scoped, tag = 'output window, operand 0, single buffered']
    %14 = vsyncpa [#allocation4], 0
    %15 = vsyncpa [#allocation7], 0
    %16 = vsyncpa [#allocation10], 0
    %17 = vsyncpa [#allocation5], 0
    // Predicated region
    $region2: #{tpu_custom_call.1} parent=1 // pred_check
      _
    $region3: #{tpu_custom_call.1} parent=1 // pred_check_branch
      %19 = sbr.rel (0) target = $region5
    $region4: #{tpu_custom_call.1} parent=1 // pred_region
      %21 = vsyncadd [#allocation4], 768
      %s22 = sshll.u32 %s0, 4
      %s23 = int_to_ptr.hbm [resolvable:$true] %s22
      %s24 = sshll.u32 [#allocation3], 4
      %s25 = int_to_ptr.vmem [resolvable:$true] %s24
      %30 = dma.hbm_to_vmem [thread:$0]  %s23, 256, %s25, [#allocation4], 256, 256, 16
    $region5: #{tpu_custom_call.1} parent=1 // pred_fallthru
      _
    // Predicated region
    $region6: #{tpu_custom_call.1} parent=1 // pred_check
      _
    $region7: #{tpu_custom_call.1} parent=1 // pred_check_branch
      %32 = sbr.rel (0) target = $region9
    $region8: #{tpu_custom_call.1} parent=1 // pred_region
      %34 = vsyncadd [#allocation7], 768
      %s35 = sshll.u32 %s1, 4
      %s36 = int_to_ptr.hbm [resolvable:$true] %s35
      %s37 = sshll.u32 [#allocation6], 4
      %s38 = int_to_ptr.vmem [resolvable:$true] %s37
      %43 = dma.hbm_to_vmem [thread:$0]  %s36, 256, %s38, [#allocation7], 256, 256, 16
    $region9: #{tpu_custom_call.1} parent=1 // pred_fallthru
      _
    // Predicated region
    $region10: #{tpu_custom_call.1} parent=1 // pred_check
      _
    $region11: #{tpu_custom_call.1} parent=1 // pred_check_branch
      %45 = sbr.rel (0) target = $region13
    $region12: #{tpu_custom_call.1} parent=1 // pred_region
      _
    $region13: #{tpu_custom_call.1} parent=1 // pred_fallthru
      _
    // Predicated region
    $region14: #{tpu_custom_call.1} parent=1 // pred_check
      _
    $region15: #{tpu_custom_call.1} parent=1 // pred_check_branch
      %47 = sbr.rel (0) target = $region17
    $region16: #{tpu_custom_call.1} parent=1 // pred_region
      %49 = vsyncadd [#allocation7], 0
      %s50 = sshll.u32 %s3, 4
      %s51 = int_to_ptr.hbm [resolvable:$true] %s50
      %s52 = sshll.u32 [#allocation8], 4
      %s53 = int_to_ptr.vmem [resolvable:$true] %s52
      %58 = dma.hbm_to_vmem [thread:$0]  %s51, 16384, %s53, [#allocation7], 128, 128, 8
    $region17: #{tpu_custom_call.1} parent=1 // pred_fallthru
      _
    // Predicated region
    $region18: #{tpu_custom_call.1} parent=1 // pred_check
      _
    $region19: #{tpu_custom_call.1} parent=1 // pred_check_branch
      %60 = sbr.rel (0) target = $region21
    $region20: #{tpu_custom_call.1} parent=1 // pred_region
      _
    $region21: #{tpu_custom_call.1} parent=1 // pred_fallthru
      _
    // Predicated region
    $region22: #{tpu_custom_call.1} parent=1 // pred_check
      _
    $region23: #{tpu_custom_call.1} parent=1 // pred_check_branch
      %62 = sbr.rel (0) target = $region25
    $region24: #{tpu_custom_call.1} parent=1 // pred_region
      _
    $region25: #{tpu_custom_call.1} parent=1 // pred_fallthru
      _
    // Predicated region
    $region26: #{tpu_custom_call.1} parent=1 // pred_check
      _
    $region27: #{tpu_custom_call.1} parent=1 // pred_check_branch
      %64 = sbr.rel (0) target = $region29
    $region28: #{tpu_custom_call.1} parent=1 // pred_region
      %66 = vsyncadd [#allocation10], 0
      %s67 = sshll.u32 %s6, 4
      %s68 = int_to_ptr.hbm [resolvable:$true] %s67
      %s69 = sshll.u32 [#allocation9], 4
      %s70 = int_to_ptr.vmem [resolvable:$true] %s69
      %75 = dma.hbm_to_vmem [thread:$0]  %s68, 2048, %s70, [#allocation10], 128, 128, 8
    $region29: #{tpu_custom_call.1} parent=1 // pred_fallthru
      _
    // Predicated region
    $region30: #{tpu_custom_call.1} parent=1 // pred_check
      _
    $region31: #{tpu_custom_call.1} parent=1 // pred_check_branch
      %77 = sbr.rel (0) target = $region33
    $region32: #{tpu_custom_call.1} parent=1 // pred_region
      _
    $region33: #{tpu_custom_call.1} parent=1 // pred_fallthru
      _
    // Predicated region
    $region34: #{tpu_custom_call.1} parent=1 // pred_check
      _
    $region35: #{tpu_custom_call.1} parent=1 // pred_check_branch
      %79 = sbr.rel (0) target = $region37
    $region36: #{tpu_custom_call.1} parent=1 // pred_region
      %81 = dma.done [#allocation4], 1024
    $region37: #{tpu_custom_call.1} parent=1 // pred_fallthru
      _
    // Predicated region
    $region38: #{tpu_custom_call.1} parent=1 // pred_check
      _
    $region39: #{tpu_custom_call.1} parent=1 // pred_check_branch
      %83 = sbr.rel (0) target = $region41
    $region40: #{tpu_custom_call.1} parent=1 // pred_region
      %85 = dma.done [#allocation7], 1024
    $region41: #{tpu_custom_call.1} parent=1 // pred_fallthru
      _
    // Predicated region
    $region42: #{tpu_custom_call.1} parent=1 // pred_check
      _
    $region43: #{tpu_custom_call.1} parent=1 // pred_check_branch
      %87 = sbr.rel (0) target = $region45
    $region44: #{tpu_custom_call.1} parent=1 // pred_region
      %89 = dma.done [#allocation7], 16384
    $region45: #{tpu_custom_call.1} parent=1 // pred_fallthru
      _
    // Predicated region
    $region46: #{tpu_custom_call.1} parent=1 // pred_check
      _
    $region47: #{tpu_custom_call.1} parent=1 // pred_check_branch
      %91 = sbr.rel (0) target = $region49
    $region48: #{tpu_custom_call.1} parent=1 // pred_region
      %93 = dma.done [#allocation10], 2048
    $region49: #{tpu_custom_call.1} parent=1 // pred_fallthru
      _
    %v94 = vld [vmem:[#allocation3] sm:$0xff]
    %v95 = vld [vmem:[#allocation3 + $0x8] sm:$0xff]
    %v96 = vld [vmem:[#allocation3 + $0x10] sm:$0xff]
    %v97 = vld [vmem:[#allocation3 + $0x18] sm:$0xff]
    %v98 = vld [vmem:[#allocation3 + $0x20] sm:$0xff]
    %v99 = vld [vmem:[#allocation3 + $0x28] sm:$0xff]
    %v100 = vld [vmem:[#allocation3 + $0x30] sm:$0xff]
    %v101 = vld [vmem:[#allocation3 + $0x38] sm:$0xff]
    %v102 = vld [vmem:[#allocation6] sm:$0xff]
    %v103 = vld [vmem:[#allocation6 + $0x8] sm:$0xff]
    %v104 = vld [vmem:[#allocation6 + $0x10] sm:$0xff]
    %v105 = vld [vmem:[#allocation6 + $0x18] sm:$0xff]
    %v106 = vld [vmem:[#allocation6 + $0x20] sm:$0xff]
    %v107 = vld [vmem:[#allocation6 + $0x28] sm:$0xff]
    %v108 = vld [vmem:[#allocation6 + $0x30] sm:$0xff]
    %v109 = vld [vmem:[#allocation6 + $0x38] sm:$0xff]
    %v110 = vld [vmem:[%s2] sm:$0xff]
    %v111 = vld [vmem:[#allocation8] sm:$0xff]
    %v112 = vld [vmem:[#allocation8 + $0x8] sm:$0xff]
    %v113 = vld [vmem:[#allocation8 + $0x10] sm:$0xff]
    %v114 = vld [vmem:[#allocation8 + $0x18] sm:$0xff]
    %v115 = vld [vmem:[#allocation8 + $0x20] sm:$0xff]
    %v116 = vld [vmem:[#allocation8 + $0x28] sm:$0xff]
    %v117 = vld [vmem:[#allocation8 + $0x30] sm:$0xff]
    %v118 = vld [vmem:[#allocation8 + $0x38] sm:$0xff]
    %v119 = vld [vmem:[#allocation8 + $0x40] sm:$0xff]
    %v120 = vld [vmem:[#allocation8 + $0x48] sm:$0xff]
    %v121 = vld [vmem:[#allocation8 + $0x50] sm:$0xff]
    %v122 = vld [vmem:[#allocation8 + $0x58] sm:$0xff]
    %v123 = vld [vmem:[#allocation8 + $0x60] sm:$0xff]
    %v124 = vld [vmem:[#allocation8 + $0x68] sm:$0xff]
    %v125 = vld [vmem:[#allocation8 + $0x70] sm:$0xff]
    %v126 = vld [vmem:[#allocation8 + $0x78] sm:$0xff]
    %v127 = vld [vmem:[#allocation8 + $0x80] sm:$0xff]
    %v128 = vld [vmem:[#allocation8 + $0x88] sm:$0xff]
    %v129 = vld [vmem:[#allocation8 + $0x90] sm:$0xff]
    %v130 = vld [vmem:[#allocation8 + $0x98] sm:$0xff]
    %v131 = vld [vmem:[#allocation8 + $0xa0] sm:$0xff]
    %v132 = vld [vmem:[#allocation8 + $0xa8] sm:$0xff]
    %v133 = vld [vmem:[#allocation8 + $0xb0] sm:$0xff]
    %v134 = vld [vmem:[#allocation8 + $0xb8] sm:$0xff]
    %v135 = vld [vmem:[#allocation8 + $0xc0] sm:$0xff]
    %v136 = vld [vmem:[#allocation8 + $0xc8] sm:$0xff]
    %v137 = vld [vmem:[#allocation8 + $0xd0] sm:$0xff]
    %v138 = vld [vmem:[#allocation8 + $0xd8] sm:$0xff]
    %v139 = vld [vmem:[#allocation8 + $0xe0] sm:$0xff]
    %v140 = vld [vmem:[#allocation8 + $0xe8] sm:$0xff]
    %v141 = vld [vmem:[#allocation8 + $0xf0] sm:$0xff]
    %v142 = vld [vmem:[#allocation8 + $0xf8] sm:$0xff]
    %v143 = vld [vmem:[#allocation8 + $0x100] sm:$0xff]
    %v144 = vld [vmem:[#allocation8 + $0x108] sm:$0xff]
    %v145 = vld [vmem:[#allocation8 + $0x110] sm:$0xff]
    %v146 = vld [vmem:[#allocation8 + $0x118] sm:$0xff]
    %v147 = vld [vmem:[#allocation8 + $0x120] sm:$0xff]
    %v148 = vld [vmem:[#allocation8 + $0x128] sm:$0xff]
    %v149 = vld [vmem:[#allocation8 + $0x130] sm:$0xff]
    %v150 = vld [vmem:[#allocation8 + $0x138] sm:$0xff]
    %v151 = vld [vmem:[#allocation8 + $0x140] sm:$0xff]
    %v152 = vld [vmem:[#allocation8 + $0x148] sm:$0xff]
    %v153 = vld [vmem:[#allocation8 + $0x150] sm:$0xff]
    %v154 = vld [vmem:[#allocation8 + $0x158] sm:$0xff]
    %v155 = vld [vmem:[#allocation8 + $0x160] sm:$0xff]
    %v156 = vld [vmem:[#allocation8 + $0x168] sm:$0xff]
    %v157 = vld [vmem:[#allocation8 + $0x170] sm:$0xff]
    %v158 = vld [vmem:[#allocation8 + $0x178] sm:$0xff]
    %v159 = vld [vmem:[#allocation8 + $0x180] sm:$0xff]
    %v160 = vld [vmem:[#allocation8 + $0x188] sm:$0xff]
    %v161 = vld [vmem:[#allocation8 + $0x190] sm:$0xff]
    %v162 = vld [vmem:[#allocation8 + $0x198] sm:$0xff]
    %v163 = vld [vmem:[#allocation8 + $0x1a0] sm:$0xff]
    %v164 = vld [vmem:[#allocation8 + $0x1a8] sm:$0xff]
    %v165 = vld [vmem:[#allocation8 + $0x1b0] sm:$0xff]
    %v166 = vld [vmem:[#allocation8 + $0x1b8] sm:$0xff]
    %v167 = vld [vmem:[#allocation8 + $0x1c0] sm:$0xff]
    %v168 = vld [vmem:[#allocation8 + $0x1c8] sm:$0xff]
    %v169 = vld [vmem:[#allocation8 + $0x1d0] sm:$0xff]
    %v170 = vld [vmem:[#allocation8 + $0x1d8] sm:$0xff]
    %v171 = vld [vmem:[#allocation8 + $0x1e0] sm:$0xff]
    %v172 = vld [vmem:[#allocation8 + $0x1e8] sm:$0xff]
    %v173 = vld [vmem:[#allocation8 + $0x1f0] sm:$0xff]
    %v174 = vld [vmem:[#allocation8 + $0x1f8] sm:$0xff]
    %v175 = vld [vmem:[#allocation8 + $0x200] sm:$0xff]
    %v176 = vld [vmem:[#allocation8 + $0x208] sm:$0xff]
    %v177 = vld [vmem:[#allocation8 + $0x210] sm:$0xff]
    %v178 = vld [vmem:[#allocation8 + $0x218] sm:$0xff]
    %v179 = vld [vmem:[#allocation8 + $0x220] sm:$0xff]
    %v180 = vld [vmem:[#allocation8 + $0x228] sm:$0xff]
    %v181 = vld [vmem:[#allocation8 + $0x230] sm:$0xff]
    %v182 = vld [vmem:[#allocation8 + $0x238] sm:$0xff]
    %v183 = vld [vmem:[#allocation8 + $0x240] sm:$0xff]
    %v184 = vld [vmem:[#allocation8 + $0x248] sm:$0xff]
    %v185 = vld [vmem:[#allocation8 + $0x250] sm:$0xff]
    %v186 = vld [vmem:[#allocation8 + $0x258] sm:$0xff]
    %v187 = vld [vmem:[#allocation8 + $0x260] sm:$0xff]
    %v188 = vld [vmem:[#allocation8 + $0x268] sm:$0xff]
    %v189 = vld [vmem:[#allocation8 + $0x270] sm:$0xff]
    %v190 = vld [vmem:[#allocation8 + $0x278] sm:$0xff]
    %v191 = vld [vmem:[#allocation8 + $0x280] sm:$0xff]
    %v192 = vld [vmem:[#allocation8 + $0x288] sm:$0xff]
    %v193 = vld [vmem:[#allocation8 + $0x290] sm:$0xff]
    %v194 = vld [vmem:[#allocation8 + $0x298] sm:$0xff]
    %v195 = vld [vmem:[#allocation8 + $0x2a0] sm:$0xff]
    %v196 = vld [vmem:[#allocation8 + $0x2a8] sm:$0xff]
    %v197 = vld [vmem:[#allocation8 + $0x2b0] sm:$0xff]
    %v198 = vld [vmem:[#allocation8 + $0x2b8] sm:$0xff]
    %v199 = vld [vmem:[#allocation8 + $0x2c0] sm:$0xff]
    %v200 = vld [vmem:[#allocation8 + $0x2c8] sm:$0xff]
    %v201 = vld [vmem:[#allocation8 + $0x2d0] sm:$0xff]
    %v202 = vld [vmem:[#allocation8 + $0x2d8] sm:$0xff]
    %v203 = vld [vmem:[#allocation8 + $0x2e0] sm:$0xff]
    %v204 = vld [vmem:[#allocation8 + $0x2e8] sm:$0xff]
    %v205 = vld [vmem:[#allocation8 + $0x2f0] sm:$0xff]
    %v206 = vld [vmem:[#allocation8 + $0x2f8] sm:$0xff]
    %v207 = vld [vmem:[#allocation8 + $0x300] sm:$0xff]
    %v208 = vld [vmem:[#allocation8 + $0x308] sm:$0xff]
    %v209 = vld [vmem:[#allocation8 + $0x310] sm:$0xff]
    %v210 = vld [vmem:[#allocation8 + $0x318] sm:$0xff]
    %v211 = vld [vmem:[#allocation8 + $0x320] sm:$0xff]
    %v212 = vld [vmem:[#allocation8 + $0x328] sm:$0xff]
    %v213 = vld [vmem:[#allocation8 + $0x330] sm:$0xff]
    %v214 = vld [vmem:[#allocation8 + $0x338] sm:$0xff]
    %v215 = vld [vmem:[#allocation8 + $0x340] sm:$0xff]
    %v216 = vld [vmem:[#allocation8 + $0x348] sm:$0xff]
    %v217 = vld [vmem:[#allocation8 + $0x350] sm:$0xff]
    %v218 = vld [vmem:[#allocation8 + $0x358] sm:$0xff]
    %v219 = vld [vmem:[#allocation8 + $0x360] sm:$0xff]
    %v220 = vld [vmem:[#allocation8 + $0x368] sm:$0xff]
    %v221 = vld [vmem:[#allocation8 + $0x370] sm:$0xff]
    %v222 = vld [vmem:[#allocation8 + $0x378] sm:$0xff]
    %v223 = vld [vmem:[#allocation8 + $0x380] sm:$0xff]
    %v224 = vld [vmem:[#allocation8 + $0x388] sm:$0xff]
    %v225 = vld [vmem:[#allocation8 + $0x390] sm:$0xff]
    %v226 = vld [vmem:[#allocation8 + $0x398] sm:$0xff]
    %v227 = vld [vmem:[#allocation8 + $0x3a0] sm:$0xff]
    %v228 = vld [vmem:[#allocation8 + $0x3a8] sm:$0xff]
    %v229 = vld [vmem:[#allocation8 + $0x3b0] sm:$0xff]
    %v230 = vld [vmem:[#allocation8 + $0x3b8] sm:$0xff]
    %v231 = vld [vmem:[#allocation8 + $0x3c0] sm:$0xff]
    %v232 = vld [vmem:[#allocation8 + $0x3c8] sm:$0xff]
    %v233 = vld [vmem:[#allocation8 + $0x3d0] sm:$0xff]
    %v234 = vld [vmem:[#allocation8 + $0x3d8] sm:$0xff]
    %v235 = vld [vmem:[#allocation8 + $0x3e0] sm:$0xff]
    %v236 = vld [vmem:[#allocation8 + $0x3e8] sm:$0xff]
    %v237 = vld [vmem:[#allocation8 + $0x3f0] sm:$0xff]
    %v238 = vld [vmem:[#allocation8 + $0x3f8] sm:$0xff]
    %v239 = vld [vmem:[%s4] sm:$0x1]
    %v240 = vld [vmem:[%s5] sm:$0x1]
    %v241 = vld [vmem:[#allocation9] sm:$0xff]
    %v242 = vld [vmem:[#allocation9 + $0x8] sm:$0xff]
    %v243 = vld [vmem:[#allocation9 + $0x10] sm:$0xff]
    %v244 = vld [vmem:[#allocation9 + $0x18] sm:$0xff]
    %v245 = vld [vmem:[#allocation9 + $0x20] sm:$0xff]
    %v246 = vld [vmem:[#allocation9 + $0x28] sm:$0xff]
    %v247 = vld [vmem:[#allocation9 + $0x30] sm:$0xff]
    %v248 = vld [vmem:[#allocation9 + $0x38] sm:$0xff]
    %v249 = vld [vmem:[#allocation9 + $0x40] sm:$0xff]
    %v250 = vld [vmem:[#allocation9 + $0x48] sm:$0xff]
    %v251 = vld [vmem:[#allocation9 + $0x50] sm:$0xff]
    %v252 = vld [vmem:[#allocation9 + $0x58] sm:$0xff]
    %v253 = vld [vmem:[#allocation9 + $0x60] sm:$0xff]
    %v254 = vld [vmem:[#allocation9 + $0x68] sm:$0xff]
    %v255 = vld [vmem:[#allocation9 + $0x70] sm:$0xff]
    %v256 = vld [vmem:[#allocation9 + $0x78] sm:$0xff]
    %s257 = sld [smem:[#allocation2]]
    %v259 = vperm.slane %v239, 0
    %269 = vst [vmem:[#allocation1] ss:$4 sm:$0xff] %v94
    %s270 = scalar_lea.vmem [#allocation1], 1
    %271 = vst [vmem:[%s270] ss:$4 sm:$0xff] %v96
    %s272 = scalar_lea.vmem [#allocation1], 2
    %273 = vst [vmem:[%s272] ss:$4 sm:$0xff] %v98
    %s274 = scalar_lea.vmem [#allocation1], 3
    %275 = vst [vmem:[%s274] ss:$4 sm:$0xff] %v100
    %s276 = scalar_lea.vmem [#allocation1], 32
    %277 = vst [vmem:[%s276] ss:$4 sm:$0xff] %v95
    %s278 = scalar_lea.vmem [#allocation1], 33
    %279 = vst [vmem:[%s278] ss:$4 sm:$0xff] %v97
    %s280 = scalar_lea.vmem [#allocation1], 34
    %281 = vst [vmem:[%s280] ss:$4 sm:$0xff] %v99
    %s282 = scalar_lea.vmem [#allocation1], 35
    %283 = vst [vmem:[%s282] ss:$4 sm:$0xff] %v101
    %v284 = vld.sshfl [vmem:[#allocation1] sm:$0xff pattern:$0x73625140]
    %v285 = vld.sshfl [vmem:[#allocation1 + $0x8] sm:$0xff pattern:$0x73625140]
    %v286 = vld.sshfl [vmem:[#allocation1 + $0x10] sm:$0xff pattern:$0x73625140]
    %v287 = vld.sshfl [vmem:[#allocation1 + $0x18] sm:$0xff pattern:$0x73625140]
    %v288 = vld.sshfl [vmem:[#allocation1 + $0x20] sm:$0xff pattern:$0x73625140]
    %v289 = vld.sshfl [vmem:[#allocation1 + $0x28] sm:$0xff pattern:$0x73625140]
    %v290 = vld.sshfl [vmem:[#allocation1 + $0x30] sm:$0xff pattern:$0x73625140]
    %v291 = vld.sshfl [vmem:[#allocation1 + $0x38] sm:$0xff pattern:$0x73625140]
    %300 = vmatpush.msra.mxu0 %v126
    %301 = vmatpush.msra.mxu0 %v125
    %302 = vmatpush.msra.mxu0 %v124
    %303 = vmatpush.msra.mxu0 %v123
    %304 = vmatpush.msra.mxu0 %v122
    %305 = vmatpush.msra.mxu0 %v121
    %306 = vmatpush.msra.mxu0 %v120
    %307 = vmatpush.msra.mxu0 %v119
    %308 = vmatpush.msra.mxu0 %v118
    %309 = vmatpush.msra.mxu0 %v117
    %310 = vmatpush.msra.mxu0 %v116
    %311 = vmatpush.msra.mxu0 %v115
    %312 = vmatpush.msra.mxu0 %v114
    %313 = vmatpush.msra.mxu0 %v113
    %314 = vmatpush.msra.mxu0 %v112
    %315 = vmatpush.msra.mxu0 %v111
    %316 = vmatmul.f32.gmra.mxu0 %v284
    %v317 = vpop.f32.mrf.mxu0
    %v318 = vadd.f32 %v259, %v317
    %319 = vdwg.mxu0
    %320 = vmatpush.msra.mxu0 %v142
    %321 = vmatpush.msra.mxu0 %v141
    %322 = vmatpush.msra.mxu0 %v140
    %323 = vmatpush.msra.mxu0 %v139
    %324 = vmatpush.msra.mxu0 %v138
    %325 = vmatpush.msra.mxu0 %v137
    %326 = vmatpush.msra.mxu0 %v136
    %327 = vmatpush.msra.mxu0 %v135
    %328 = vmatpush.msra.mxu0 %v134
    %329 = vmatpush.msra.mxu0 %v133
    %330 = vmatpush.msra.mxu0 %v132
    %331 = vmatpush.msra.mxu0 %v131
    %332 = vmatpush.msra.mxu0 %v130
    %333 = vmatpush.msra.mxu0 %v129
    %334 = vmatpush.msra.mxu0 %v128
    %335 = vmatpush.msra.mxu0 %v127
    %336 = vmatmul.f32.gmra.mxu0 %v285
    %v337 = vpop.f32.mrf.mxu0
    %v338 = vadd.f32 %v318, %v337
    %339 = vdwg.mxu0
    %340 = vmatpush.msra.mxu0 %v158
    %341 = vmatpush.msra.mxu0 %v157
    %342 = vmatpush.msra.mxu0 %v156
    %343 = vmatpush.msra.mxu0 %v155
    %344 = vmatpush.msra.mxu0 %v154
    %345 = vmatpush.msra.mxu0 %v153
    %346 = vmatpush.msra.mxu0 %v152
    %347 = vmatpush.msra.mxu0 %v151
    %348 = vmatpush.msra.mxu0 %v150
    %349 = vmatpush.msra.mxu0 %v149
    %350 = vmatpush.msra.mxu0 %v148
    %351 = vmatpush.msra.mxu0 %v147
    %352 = vmatpush.msra.mxu0 %v146
    %353 = vmatpush.msra.mxu0 %v145
    %354 = vmatpush.msra.mxu0 %v144
    %355 = vmatpush.msra.mxu0 %v143
    %356 = vmatmul.f32.gmra.mxu0 %v286
    %v357 = vpop.f32.mrf.mxu0
    %v358 = vadd.f32 %v338, %v357
    %359 = vdwg.mxu0
    %360 = vmatpush.msra.mxu0 %v174
    %361 = vmatpush.msra.mxu0 %v173
    %362 = vmatpush.msra.mxu0 %v172
    %363 = vmatpush.msra.mxu0 %v171
    %364 = vmatpush.msra.mxu0 %v170
    %365 = vmatpush.msra.mxu0 %v169
    %366 = vmatpush.msra.mxu0 %v168
    %367 = vmatpush.msra.mxu0 %v167
    %368 = vmatpush.msra.mxu0 %v166
    %369 = vmatpush.msra.mxu0 %v165
    %370 = vmatpush.msra.mxu0 %v164
    %371 = vmatpush.msra.mxu0 %v163
    %372 = vmatpush.msra.mxu0 %v162
    %373 = vmatpush.msra.mxu0 %v161
    %374 = vmatpush.msra.mxu0 %v160
    %375 = vmatpush.msra.mxu0 %v159
    %376 = vmatmul.f32.gmra.mxu0 %v287
    %v377 = vpop.f32.mrf.mxu0
    %v378 = vadd.f32 %v358, %v377
    %379 = vdwg.mxu0
    %380 = vmatpush.msra.mxu0 %v190
    %381 = vmatpush.msra.mxu0 %v189
    %382 = vmatpush.msra.mxu0 %v188
    %383 = vmatpush.msra.mxu0 %v187
    %384 = vmatpush.msra.mxu0 %v186
    %385 = vmatpush.msra.mxu0 %v185
    %386 = vmatpush.msra.mxu0 %v184
    %387 = vmatpush.msra.mxu0 %v183
    %388 = vmatpush.msra.mxu0 %v182
    %389 = vmatpush.msra.mxu0 %v181
    %390 = vmatpush.msra.mxu0 %v180
    %391 = vmatpush.msra.mxu0 %v179
    %392 = vmatpush.msra.mxu0 %v178
    %393 = vmatpush.msra.mxu0 %v177
    %394 = vmatpush.msra.mxu0 %v176
    %395 = vmatpush.msra.mxu0 %v175
    %396 = vmatmul.f32.gmra.mxu0 %v288
    %v397 = vpop.f32.mrf.mxu0
    %v398 = vadd.f32 %v378, %v397
    %399 = vdwg.mxu0
    %400 = vmatpush.msra.mxu0 %v206
    %401 = vmatpush.msra.mxu0 %v205
    %402 = vmatpush.msra.mxu0 %v204
    %403 = vmatpush.msra.mxu0 %v203
    %404 = vmatpush.msra.mxu0 %v202
    %405 = vmatpush.msra.mxu0 %v201
    %406 = vmatpush.msra.mxu0 %v200
    %407 = vmatpush.msra.mxu0 %v199
    %408 = vmatpush.msra.mxu0 %v198
    %409 = vmatpush.msra.mxu0 %v197
    %410 = vmatpush.msra.mxu0 %v196
    %411 = vmatpush.msra.mxu0 %v195
    %412 = vmatpush.msra.mxu0 %v194
    %413 = vmatpush.msra.mxu0 %v193
    %414 = vmatpush.msra.mxu0 %v192
    %415 = vmatpush.msra.mxu0 %v191
    %416 = vmatmul.f32.gmra.mxu0 %v289
    %v417 = vpop.f32.mrf.mxu0
    %v418 = vadd.f32 %v398, %v417
    %419 = vdwg.mxu0
    %420 = vmatpush.msra.mxu0 %v222
    %421 = vmatpush.msra.mxu0 %v221
    %422 = vmatpush.msra.mxu0 %v220
    %423 = vmatpush.msra.mxu0 %v219
    %424 = vmatpush.msra.mxu0 %v218
    %425 = vmatpush.msra.mxu0 %v217
    %426 = vmatpush.msra.mxu0 %v216
    %427 = vmatpush.msra.mxu0 %v215
    %428 = vmatpush.msra.mxu0 %v214
    %429 = vmatpush.msra.mxu0 %v213
    %430 = vmatpush.msra.mxu0 %v212
    %431 = vmatpush.msra.mxu0 %v211
    %432 = vmatpush.msra.mxu0 %v210
    %433 = vmatpush.msra.mxu0 %v209
    %434 = vmatpush.msra.mxu0 %v208
    %435 = vmatpush.msra.mxu0 %v207
    %436 = vmatmul.f32.gmra.mxu0 %v290
    %v437 = vpop.f32.mrf.mxu0
    %v438 = vadd.f32 %v418, %v437
    %439 = vdwg.mxu0
    %440 = vmatpush.msra.mxu0 %v238
    %441 = vmatpush.msra.mxu0 %v237
    %442 = vmatpush.msra.mxu0 %v236
    %443 = vmatpush.msra.mxu0 %v235
    %444 = vmatpush.msra.mxu0 %v234
    %445 = vmatpush.msra.mxu0 %v233
    %446 = vmatpush.msra.mxu0 %v232
    %447 = vmatpush.msra.mxu0 %v231
    %448 = vmatpush.msra.mxu0 %v230
    %449 = vmatpush.msra.mxu0 %v229
    %450 = vmatpush.msra.mxu0 %v228
    %451 = vmatpush.msra.mxu0 %v227
    %452 = vmatpush.msra.mxu0 %v226
    %453 = vmatpush.msra.mxu0 %v225
    %454 = vmatpush.msra.mxu0 %v224
    %455 = vmatpush.msra.mxu0 %v223
    %456 = vmatmul.f32.gmra.mxu0 %v291
    %v457 = vpop.f32.mrf.mxu0
    %v458 = vadd.f32 %v438, %v457
    %459 = vdwg.mxu0
    %468 = vst [vmem:[#allocation1] ss:$4 sm:$0xff] %v102
    %s469 = scalar_lea.vmem [#allocation1], 1
    %470 = vst [vmem:[%s469] ss:$4 sm:$0xff] %v104
    %s471 = scalar_lea.vmem [#allocation1], 2
    %472 = vst [vmem:[%s471] ss:$4 sm:$0xff] %v106
    %s473 = scalar_lea.vmem [#allocation1], 3
    %474 = vst [vmem:[%s473] ss:$4 sm:$0xff] %v108
    %s475 = scalar_lea.vmem [#allocation1], 32
    %476 = vst [vmem:[%s475] ss:$4 sm:$0xff] %v103
    %s477 = scalar_lea.vmem [#allocation1], 33
    %478 = vst [vmem:[%s477] ss:$4 sm:$0xff] %v105
    %s479 = scalar_lea.vmem [#allocation1], 34
    %480 = vst [vmem:[%s479] ss:$4 sm:$0xff] %v107
    %s481 = scalar_lea.vmem [#allocation1], 35
    %482 = vst [vmem:[%s481] ss:$4 sm:$0xff] %v109
    %v483 = vld.sshfl [vmem:[#allocation1] sm:$0xff pattern:$0x73625140]
    %v484 = vld.sshfl [vmem:[#allocation1 + $0x8] sm:$0xff pattern:$0x73625140]
    %v485 = vld.sshfl [vmem:[#allocation1 + $0x10] sm:$0xff pattern:$0x73625140]
    %v486 = vld.sshfl [vmem:[#allocation1 + $0x18] sm:$0xff pattern:$0x73625140]
    %v487 = vld.sshfl [vmem:[#allocation1 + $0x20] sm:$0xff pattern:$0x73625140]
    %v488 = vld.sshfl [vmem:[#allocation1 + $0x28] sm:$0xff pattern:$0x73625140]
    %v489 = vld.sshfl [vmem:[#allocation1 + $0x30] sm:$0xff pattern:$0x73625140]
    %v490 = vld.sshfl [vmem:[#allocation1 + $0x38] sm:$0xff pattern:$0x73625140]
    %499 = vmatpush.msra.mxu0 %v126
    %500 = vmatpush.msra.mxu0 %v125
    %501 = vmatpush.msra.mxu0 %v124
    %502 = vmatpush.msra.mxu0 %v123
    %503 = vmatpush.msra.mxu0 %v122
    %504 = vmatpush.msra.mxu0 %v121
    %505 = vmatpush.msra.mxu0 %v120
    %506 = vmatpush.msra.mxu0 %v119
    %507 = vmatpush.msra.mxu0 %v118
    %508 = vmatpush.msra.mxu0 %v117
    %509 = vmatpush.msra.mxu0 %v116
    %510 = vmatpush.msra.mxu0 %v115
    %511 = vmatpush.msra.mxu0 %v114
    %512 = vmatpush.msra.mxu0 %v113
    %513 = vmatpush.msra.mxu0 %v112
    %514 = vmatpush.msra.mxu0 %v111
    %515 = vmatmul.f32.gmra.mxu0 %v483
    %v516 = vpop.f32.mrf.mxu0
    %v517 = vadd.f32 %v259, %v516
    %518 = vdwg.mxu0
    %519 = vmatpush.msra.mxu0 %v142
    %520 = vmatpush.msra.mxu0 %v141
    %521 = vmatpush.msra.mxu0 %v140
    %522 = vmatpush.msra.mxu0 %v139
    %523 = vmatpush.msra.mxu0 %v138
    %524 = vmatpush.msra.mxu0 %v137
    %525 = vmatpush.msra.mxu0 %v136
    %526 = vmatpush.msra.mxu0 %v135
    %527 = vmatpush.msra.mxu0 %v134
    %528 = vmatpush.msra.mxu0 %v133
    %529 = vmatpush.msra.mxu0 %v132
    %530 = vmatpush.msra.mxu0 %v131
    %531 = vmatpush.msra.mxu0 %v130
    %532 = vmatpush.msra.mxu0 %v129
    %533 = vmatpush.msra.mxu0 %v128
    %534 = vmatpush.msra.mxu0 %v127
    %535 = vmatmul.f32.gmra.mxu0 %v484
    %v536 = vpop.f32.mrf.mxu0
    %v537 = vadd.f32 %v517, %v536
    %538 = vdwg.mxu0
    %539 = vmatpush.msra.mxu0 %v158
    %540 = vmatpush.msra.mxu0 %v157
    %541 = vmatpush.msra.mxu0 %v156
    %542 = vmatpush.msra.mxu0 %v155
    %543 = vmatpush.msra.mxu0 %v154
    %544 = vmatpush.msra.mxu0 %v153
    %545 = vmatpush.msra.mxu0 %v152
    %546 = vmatpush.msra.mxu0 %v151
    %547 = vmatpush.msra.mxu0 %v150
    %548 = vmatpush.msra.mxu0 %v149
    %549 = vmatpush.msra.mxu0 %v148
    %550 = vmatpush.msra.mxu0 %v147
    %551 = vmatpush.msra.mxu0 %v146
    %552 = vmatpush.msra.mxu0 %v145
    %553 = vmatpush.msra.mxu0 %v144
    %554 = vmatpush.msra.mxu0 %v143
    %555 = vmatmul.f32.gmra.mxu0 %v485
    %v556 = vpop.f32.mrf.mxu0
    %v557 = vadd.f32 %v537, %v556
    %558 = vdwg.mxu0
    %559 = vmatpush.msra.mxu0 %v174
    %560 = vmatpush.msra.mxu0 %v173
    %561 = vmatpush.msra.mxu0 %v172
    %562 = vmatpush.msra.mxu0 %v171
    %563 = vmatpush.msra.mxu0 %v170
    %564 = vmatpush.msra.mxu0 %v169
    %565 = vmatpush.msra.mxu0 %v168
    %566 = vmatpush.msra.mxu0 %v167
    %567 = vmatpush.msra.mxu0 %v166
    %568 = vmatpush.msra.mxu0 %v165
    %569 = vmatpush.msra.mxu0 %v164
    %570 = vmatpush.msra.mxu0 %v163
    %571 = vmatpush.msra.mxu0 %v162
    %572 = vmatpush.msra.mxu0 %v161
    %573 = vmatpush.msra.mxu0 %v160
    %574 = vmatpush.msra.mxu0 %v159
    %575 = vmatmul.f32.gmra.mxu0 %v486
    %v576 = vpop.f32.mrf.mxu0
    %v577 = vadd.f32 %v557, %v576
    %578 = vdwg.mxu0
    %579 = vmatpush.msra.mxu0 %v190
    %580 = vmatpush.msra.mxu0 %v189
    %581 = vmatpush.msra.mxu0 %v188
    %582 = vmatpush.msra.mxu0 %v187
    %583 = vmatpush.msra.mxu0 %v186
    %584 = vmatpush.msra.mxu0 %v185
    %585 = vmatpush.msra.mxu0 %v184
    %586 = vmatpush.msra.mxu0 %v183
    %587 = vmatpush.msra.mxu0 %v182
    %588 = vmatpush.msra.mxu0 %v181
    %589 = vmatpush.msra.mxu0 %v180
    %590 = vmatpush.msra.mxu0 %v179
    %591 = vmatpush.msra.mxu0 %v178
    %592 = vmatpush.msra.mxu0 %v177
    %593 = vmatpush.msra.mxu0 %v176
    %594 = vmatpush.msra.mxu0 %v175
    %595 = vmatmul.f32.gmra.mxu0 %v487
    %v596 = vpop.f32.mrf.mxu0
    %v597 = vadd.f32 %v577, %v596
    %598 = vdwg.mxu0
    %599 = vmatpush.msra.mxu0 %v206
    %600 = vmatpush.msra.mxu0 %v205
    %601 = vmatpush.msra.mxu0 %v204
    %602 = vmatpush.msra.mxu0 %v203
    %603 = vmatpush.msra.mxu0 %v202
    %604 = vmatpush.msra.mxu0 %v201
    %605 = vmatpush.msra.mxu0 %v200
    %606 = vmatpush.msra.mxu0 %v199
    %607 = vmatpush.msra.mxu0 %v198
    %608 = vmatpush.msra.mxu0 %v197
    %609 = vmatpush.msra.mxu0 %v196
    %610 = vmatpush.msra.mxu0 %v195
    %611 = vmatpush.msra.mxu0 %v194
    %612 = vmatpush.msra.mxu0 %v193
    %613 = vmatpush.msra.mxu0 %v192
    %614 = vmatpush.msra.mxu0 %v191
    %615 = vmatmul.f32.gmra.mxu0 %v488
    %v616 = vpop.f32.mrf.mxu0
    %v617 = vadd.f32 %v597, %v616
    %618 = vdwg.mxu0
    %619 = vmatpush.msra.mxu0 %v222
    %620 = vmatpush.msra.mxu0 %v221
    %621 = vmatpush.msra.mxu0 %v220
    %622 = vmatpush.msra.mxu0 %v219
    %623 = vmatpush.msra.mxu0 %v218
    %624 = vmatpush.msra.mxu0 %v217
    %625 = vmatpush.msra.mxu0 %v216
    %626 = vmatpush.msra.mxu0 %v215
    %627 = vmatpush.msra.mxu0 %v214
    %628 = vmatpush.msra.mxu0 %v213
    %629 = vmatpush.msra.mxu0 %v212
    %630 = vmatpush.msra.mxu0 %v211
    %631 = vmatpush.msra.mxu0 %v210
    %632 = vmatpush.msra.mxu0 %v209
    %633 = vmatpush.msra.mxu0 %v208
    %634 = vmatpush.msra.mxu0 %v207
    %635 = vmatmul.f32.gmra.mxu0 %v489
    %v636 = vpop.f32.mrf.mxu0
    %v637 = vadd.f32 %v617, %v636
    %638 = vdwg.mxu0
    %639 = vmatpush.msra.mxu0 %v238
    %640 = vmatpush.msra.mxu0 %v237
    %641 = vmatpush.msra.mxu0 %v236
    %642 = vmatpush.msra.mxu0 %v235
    %643 = vmatpush.msra.mxu0 %v234
    %644 = vmatpush.msra.mxu0 %v233
    %645 = vmatpush.msra.mxu0 %v232
    %646 = vmatpush.msra.mxu0 %v231
    %647 = vmatpush.msra.mxu0 %v230
    %648 = vmatpush.msra.mxu0 %v229
    %649 = vmatpush.msra.mxu0 %v228
    %650 = vmatpush.msra.mxu0 %v227
    %651 = vmatpush.msra.mxu0 %v226
    %652 = vmatpush.msra.mxu0 %v225
    %653 = vmatpush.msra.mxu0 %v224
    %654 = vmatpush.msra.mxu0 %v223
    %655 = vmatmul.f32.gmra.mxu0 %v490
    %v656 = vpop.f32.mrf.mxu0
    %v657 = vadd.f32 %v637, %v656
    %658 = vdwg.mxu0
    %vm659 = vcmp.gt.f32.partialorder %v458, 0.0
    %v660 = vmul.f32 %v458, 0.2
    %v661 = vsel %vm659, %v458, %v660
    %vm662 = vcmp.gt.f32.partialorder %v657, 0.0
    %v663 = vmul.f32 %v657, 0.2
    %v664 = vsel %vm662, %v657, %v663
    %v665 = vlaneseq
    %v666 = vshrl.u32 %v665, 7
    %s667 = smul.u32 0, 8
    %v668 = vstv %s667
    %v669 = vadd.s32 %v666, %v668
    %vm670 = vcmp.lt.s32.totalorder %v669, 2
    %s671 = ssub.s32 2, %s667
    %p672 = scmp.gt.s32.totalorder %s671, 0
    %s673 = scalar_select %p672, %s671, 0
    %p674 = scmp.lt.s32.totalorder %s673, 8
    %s675 = scalar_select %p674, %s673, 8
    %s676 = scvt.s32.f32 %s675
    %v678 = vperm.slane %v240, 0
    %v680 = vmul.f32 %v661, %v678
    %v681 = vsel %vm670, 1, 0
    %vm682 = vcmp.eq.s32.totalorder %v681, 1
    %v683 = vsel %vm682, %v680, 0.0
    %684 = vadd.xlane.f32.xlu0 %v683
    %v685 = vpop.xlane.xlu0 %684
    %v686 = vrot.slane %v685, 4
    %v687 = vadd.f32 %v685, %v686
    %v688 = vrot.slane %v687, 2
    %v689 = vadd.f32 %v687, %v688
    %v690 = vrot.slane %v689, 1
    %v691 = vadd.f32 %v689, %v690
    %s692 = vtos %v691
    %s693 = smul.f32 %s257, %s676
    %s694 = sadd.f32 %s692, %s693
    %v695 = vmul.f32 %v664, %v678
    %v696 = vsel %vm682, %v695, 0.0
    %697 = vadd.xlane.f32.xlu0 %v696
    %v698 = vpop.xlane.xlu0 %697
    %v699 = vrot.slane %v698, 4
    %v700 = vadd.f32 %v698, %v699
    %v701 = vrot.slane %v700, 2
    %v702 = vadd.f32 %v700, %v701
    %v703 = vrot.slane %v702, 1
    %v704 = vadd.f32 %v702, %v703
    %s705 = vtos %v704
    %s706 = sadd.f32 %s705, %s693
    %708 = vset.pattern.permute.xlu0 0
    %709 = vperm.xlu0 %708, %v110
    %v710 = vpop.permute.xlu0 %709
    %v712 = vmul.f32 %v710, %v458
    %v713 = vsub.f32 1.0, %v110
    %715 = vset.pattern.permute.xlu0 0
    %716 = vperm.xlu0 %715, %v713
    %v717 = vpop.permute.xlu0 %716
    %v719 = vmul.f32 %v717, %v657
    %v720 = vadd.f32 %v712, %v719
    %vm721 = vcmp.gt.f32.partialorder %v720, 0.0
    %v722 = vsel %vm721, 1.0, 0.2
    %v723 = vmul.f32 %v722, %v678
    %724 = vmatpush.msra.mxu0 %v256
    %725 = vmatpush.msra.mxu0 %v255
    %726 = vmatpush.msra.mxu0 %v254
    %727 = vmatpush.msra.mxu0 %v253
    %728 = vmatpush.msra.mxu0 %v252
    %729 = vmatpush.msra.mxu0 %v251
    %730 = vmatpush.msra.mxu0 %v250
    %731 = vmatpush.msra.mxu0 %v249
    %732 = vmatpush.msra.mxu0 %v248
    %733 = vmatpush.msra.mxu0 %v247
    %734 = vmatpush.msra.mxu0 %v246
    %735 = vmatpush.msra.mxu0 %v245
    %736 = vmatpush.msra.mxu0 %v244
    %737 = vmatpush.msra.mxu0 %v243
    %738 = vmatpush.msra.mxu0 %v242
    %739 = vmatpush.msra.mxu0 %v241
    %740 = vmatmul.f32.gmra.mxu0 %v723
    %v741 = vpop.f32.mrf.mxu0
    %v742 = vadd.f32 0.0, %v741
    %743 = vdwg.mxu0
    %v744 = vmul.f32 %v742, %v723
    %745 = vadd.xlane.f32.xlu0 %v744
    %v746 = vpop.xlane.xlu0 %745
    %v747 = vmax.f32 %v746, 0.0
    %v748 = vrsqrt.pop %v747
    %v749 = vmul.f32 %v748, %v747
    %v750 = vmul.f32 %v749, %v748
    %v751 = vmul.f32 0.5, %v750
    %v752 = vsub.f32 1.5, %v751
    %v753 = vmul.f32 %v748, %v752
    %v754 = vmul.f32 %v747, %v753
    %vm755 = vcmp.eq.f32.partialorder %v747, inf
    %v756 = vsel %vm755, %v747, %v754
    %vm757 = vcmp.eq.f32.partialorder %v747, 0.0
    %v758 = vand.u32 %v747, 2147483648
    %v759 = vsel %vm757, %v758, %v756
    %v760 = vsub.f32 %v759, 1.0
    %v761 = vmul.f32 %v760, %v760
    %v762 = vsel %vm670, %v761, 0.0
    %vm763 = vcmask 7168
    %v764 = vsel %vm763, %v762, 0.0
    %765 = vadd.xlane.f32.xlu0 %v764
    %v766 = vpop.xlane.xlu0 %765
    %v767 = vrot.slane %v766, 4
    %v768 = vadd.f32 %v766, %v767
    %v769 = vrot.slane %v768, 2
    %v770 = vadd.f32 %v768, %v769
    %v771 = vrot.slane %v770, 1
    %v772 = vadd.f32 %v770, %v771
    %s773 = vtos %v772
    %v774 = vlaneseq
    %v775 = vand.u32 %v774, 127
    %vm776 = vcmp.eq.s32.totalorder %v666, 0
    %vm777 = vcmp.eq.s32.totalorder %v775, 0
    %vm778 = vmand %vm776, %vm777
    %v779 = vstv %s694
    %v780 = vsel %vm778, %v779, 0.0
    %vm781 = vcmp.eq.s32.totalorder %v775, 1
    %vm782 = vmand %vm776, %vm781
    %v783 = vstv %s706
    %v784 = vsel %vm782, %v783, %v780
    %vm785 = vcmp.eq.s32.totalorder %v775, 2
    %vm786 = vmand %vm776, %vm785
    %v787 = vstv %s773
    %v788 = vsel %vm786, %v787, %v784
    %789 = vst [vmem:[#allocation11] sm:$0xff] %v788
    // Predicated region
    $region50: #{tpu_custom_call.1} parent=1 // pred_check
      _
    $region51: #{tpu_custom_call.1} parent=1 // pred_check_branch
      %791 = sbr.rel (0) target = $region53
    $region52: #{tpu_custom_call.1} parent=1 // pred_region
      %793 = vsyncadd [#allocation5], 0
      %s795 = sshll.u32 [#allocation11], 4
      %s796 = int_to_ptr.vmem [resolvable:$true] %s795
      %s797 = sshll.u32 %s8, 4
      %s798 = int_to_ptr.hbm [resolvable:$true] %s797
      %800 = dma.vmem_to_hbm [thread:$0]  %s796, 128, %s798, [#allocation5]
    $region53: #{tpu_custom_call.1} parent=1 // pred_fallthru
      _
    // Predicated region
    $region54: #{tpu_custom_call.1} parent=1 // pred_check
      _
    $region55: #{tpu_custom_call.1} parent=1 // pred_check_branch
      %802 = sbr.rel (0) target = $region57
    $region56: #{tpu_custom_call.1} parent=1 // pred_region
      %804 = dma.done [#allocation5], 128
    $region57: #{tpu_custom_call.1} parent=1 // pred_fallthru
      _
    %805 = vsyncpa [#allocation4], 1
    %806 = vsyncpa [#allocation7], 1
    %807 = vsyncpa [#allocation10], 1
    %808 = vsyncpa [#allocation5], 1

// kernel: tpu_custom_call.1
$region0: #{tpu_custom_call.1}
  #allocation0 [shape = 'u32[]', space=smem, size = 0x4, offset = 0x4, fixed_abs, tag = 'smem constant byte address 0x4 - core index']
  #allocation1 [shape = 'u32[72,128]{1,0:T(1,128)}', space=vmem, size = 0x9000, scoped, tag = 'internal scratch']
  #allocation2 [shape = 'f32[1,1]{1,0:T(1,128)S(6)}', space=smem, size = 0x200, scoped, tag = 'scoped memory for tpu_custom_call.1']
  %s0 = inlined_call_operand.hbm [shape: f32[2,1024], index: 0, kind: input, shape index: {}]
  %s1 = inlined_call_operand.hbm [shape: f32[2,1024], index: 1, kind: input, shape index: {}]
  %s2 = inlined_call_operand.vmem [shape: f32[2,1], index: 2, kind: input, shape index: {}]
  %s3 = inlined_call_operand.hbm [shape: f32[1024,128], index: 3, kind: input, shape index: {}]
  %s4 = inlined_call_operand.vmem [shape: f32[1,128], index: 4, kind: input, shape index: {}]
  %s5 = inlined_call_operand.vmem [shape: f32[1,128], index: 5, kind: input, shape index: {}]
  %s6 = inlined_call_operand.hbm [shape: f32[128,128], index: 6, kind: input, shape index: {}]
  %s7 = inlined_call_operand.<no memory space> [shape: f32[1,1], index: 7, kind: input, shape index: {}]
  %s8 = inlined_call_operand.hbm [shape: f32[8,128], index: 8, kind: output, shape index: {}]
  %s9 = sld [smem:[#allocation0]]
  $region58: #{tpu_custom_call.1} parent=0
    _
  %s11 = ssub.s32 1, %s9
  %s12 = scalar_select 0, %s11, %s9
  %13 = sst [smem:[#allocation2]] %s7
  $region1: #{tpu_custom_call.1} parent=0
    #allocation3 [shape = 'u8[32768]{0}', space=vmem, size = 0x8000, scoped, tag = 'input window, operand 0, single buffered']
    #allocation4 [shape = 's32[1]{0}', space=sflag, size = 0x4, scoped, tag = 'scoped memory for tpu_custom_call.1']
    #allocation5 [shape = 's32[1]{0}', space=sflag, size = 0x4, scoped, tag = 'scoped memory for tpu_custom_call.1']
    #allocation6 [shape = 'u8[32768]{0}', space=vmem, size = 0x8000, scoped, tag = 'input window, operand 1, single buffered']
    #allocation7 [shape = 's32[1]{0}', space=sflag, size = 0x4, scoped, tag = 'scoped memory for tpu_custom_call.1']
    #allocation8 [shape = 'u8[524288]{0}', space=vmem, size = 0x80000, scoped, tag = 'input window, operand 3, single buffered']
    #allocation9 [shape = 'u8[65536]{0}', space=vmem, size = 0x10000, scoped, tag = 'input window, operand 6, single buffered']
    #allocation10 [shape = 's32[1]{0}', space=sflag, size = 0x4, scoped, tag = 'scoped memory for tpu_custom_call.1']
    #allocation11 [shape = 'u8[4096]{0}', space=vmem, size = 0x1000, scoped, tag = 'output window, operand 0, single buffered']
    %14 = vsyncpa [#allocation4], 0
    %15 = vsyncpa [#allocation7], 0
    %16 = vsyncpa [#allocation10], 0
    %17 = vsyncpa [#allocation5], 0
    // Predicated region
    $region2: #{tpu_custom_call.1} parent=1 // pred_check
      _
    $region3: #{tpu_custom_call.1} parent=1 // pred_check_branch
      %19 = sbr.rel (0) target = $region5
    $region4: #{tpu_custom_call.1} parent=1 // pred_region
      %21 = vsyncadd [#allocation4], 768
      %s22 = sshll.u32 %s0, 4
      %s23 = int_to_ptr.hbm [resolvable:$true] %s22
      %s24 = sshll.u32 [#allocation3], 4
      %s25 = int_to_ptr.vmem [resolvable:$true] %s24
      %30 = dma.hbm_to_vmem [thread:$0]  %s23, 256, %s25, [#allocation4], 256, 256, 16
    $region5: #{tpu_custom_call.1} parent=1 // pred_fallthru
      _
    // Predicated region
    $region6: #{tpu_custom_call.1} parent=1 // pred_check
      _
    $region7: #{tpu_custom_call.1} parent=1 // pred_check_branch
      %32 = sbr.rel (0) target = $region9
    $region8: #{tpu_custom_call.1} parent=1 // pred_region
      %34 = vsyncadd [#allocation7], 768
      %s35 = sshll.u32 %s1, 4
      %s36 = int_to_ptr.hbm [resolvable:$true] %s35
      %s37 = sshll.u32 [#allocation6], 4
      %s38 = int_to_ptr.vmem [resolvable:$true] %s37
      %43 = dma.hbm_to_vmem [thread:$0]  %s36, 256, %s38, [#allocation7], 256, 256, 16
    $region9: #{tpu_custom_call.1} parent=1 // pred_fallthru
      _
    // Predicated region
    $region10: #{tpu_custom_call.1} parent=1 // pred_check
      _
    $region11: #{tpu_custom_call.1} parent=1 // pred_check_branch
      %45 = sbr.rel (0) target = $region13
    $region12: #{tpu_custom_call.1} parent=1 // pred_region
      _
    $region13: #{tpu_custom_call.1} parent=1 // pred_fallthru
      _
    // Predicated region
    $region14: #{tpu_custom_call.1} parent=1 // pred_check
      _
    $region15: #{tpu_custom_call.1} parent=1 // pred_check_branch
      %47 = sbr.rel (0) target = $region17
    $region16: #{tpu_custom_call.1} parent=1 // pred_region
      %49 = vsyncadd [#allocation7], 0
      %s50 = sshll.u32 %s3, 4
      %s51 = int_to_ptr.hbm [resolvable:$true] %s50
      %s52 = sshll.u32 [#allocation8], 4
      %s53 = int_to_ptr.vmem [resolvable:$true] %s52
      %58 = dma.hbm_to_vmem [thread:$0]  %s51, 16384, %s53, [#allocation7], 128, 128, 8
    $region17: #{tpu_custom_call.1} parent=1 // pred_fallthru
      _
    // Predicated region
    $region18: #{tpu_custom_call.1} parent=1 // pred_check
      _
    $region19: #{tpu_custom_call.1} parent=1 // pred_check_branch
      %60 = sbr.rel (0) target = $region21
    $region20: #{tpu_custom_call.1} parent=1 // pred_region
      _
    $region21: #{tpu_custom_call.1} parent=1 // pred_fallthru
      _
    // Predicated region
    $region22: #{tpu_custom_call.1} parent=1 // pred_check
      _
    $region23: #{tpu_custom_call.1} parent=1 // pred_check_branch
      %62 = sbr.rel (0) target = $region25
    $region24: #{tpu_custom_call.1} parent=1 // pred_region
      _
    $region25: #{tpu_custom_call.1} parent=1 // pred_fallthru
      _
    // Predicated region
    $region26: #{tpu_custom_call.1} parent=1 // pred_check
      _
    $region27: #{tpu_custom_call.1} parent=1 // pred_check_branch
      %64 = sbr.rel (0) target = $region29
    $region28: #{tpu_custom_call.1} parent=1 // pred_region
      %66 = vsyncadd [#allocation10], 0
      %s67 = sshll.u32 %s6, 4
      %s68 = int_to_ptr.hbm [resolvable:$true] %s67
      %s69 = sshll.u32 [#allocation9], 4
      %s70 = int_to_ptr.vmem [resolvable:$true] %s69
      %75 = dma.hbm_to_vmem [thread:$0]  %s68, 2048, %s70, [#allocation10], 128, 128, 8
    $region29: #{tpu_custom_call.1} parent=1 // pred_fallthru
      _
    // Predicated region
    $region30: #{tpu_custom_call.1} parent=1 // pred_check
      _
    $region31: #{tpu_custom_call.1} parent=1 // pred_check_branch
      %77 = sbr.rel (0) target = $region33
    $region32: #{tpu_custom_call.1} parent=1 // pred_region
      _
    $region33: #{tpu_custom_call.1} parent=1 // pred_fallthru
      _
    // Predicated region
    $region34: #{tpu_custom_call.1} parent=1 // pred_check
      _
    $region35: #{tpu_custom_call.1} parent=1 // pred_check_branch
      %79 = sbr.rel (0) target = $region37
    $region36: #{tpu_custom_call.1} parent=1 // pred_region
      %81 = dma.done [#allocation4], 1024
    $region37: #{tpu_custom_call.1} parent=1 // pred_fallthru
      _
    // Predicated region
    $region38: #{tpu_custom_call.1} parent=1 // pred_check
      _
    $region39: #{tpu_custom_call.1} parent=1 // pred_check_branch
      %83 = sbr.rel (0) target = $region41
    $region40: #{tpu_custom_call.1} parent=1 // pred_region
      %85 = dma.done [#allocation7], 1024
    $region41: #{tpu_custom_call.1} parent=1 // pred_fallthru
      _
    // Predicated region
    $region42: #{tpu_custom_call.1} parent=1 // pred_check
      _
    $region43: #{tpu_custom_call.1} parent=1 // pred_check_branch
      %87 = sbr.rel (0) target = $region45
    $region44: #{tpu_custom_call.1} parent=1 // pred_region
      %89 = dma.done [#allocation7], 16384
    $region45: #{tpu_custom_call.1} parent=1 // pred_fallthru
      _
    // Predicated region
    $region46: #{tpu_custom_call.1} parent=1 // pred_check
      _
    $region47: #{tpu_custom_call.1} parent=1 // pred_check_branch
      %91 = sbr.rel (0) target = $region49
    $region48: #{tpu_custom_call.1} parent=1 // pred_region
      %93 = dma.done [#allocation10], 2048
    $region49: #{tpu_custom_call.1} parent=1 // pred_fallthru
      _
    %v94 = vld [vmem:[#allocation3] sm:$0xff]
    %v95 = vld [vmem:[#allocation3 + $0x8] sm:$0xff]
    %v96 = vld [vmem:[#allocation3 + $0x10] sm:$0xff]
    %v97 = vld [vmem:[#allocation3 + $0x18] sm:$0xff]
    %v98 = vld [vmem:[#allocation3 + $0x20] sm:$0xff]
    %v99 = vld [vmem:[#allocation3 + $0x28] sm:$0xff]
    %v100 = vld [vmem:[#allocation3 + $0x30] sm:$0xff]
    %v101 = vld [vmem:[#allocation3 + $0x38] sm:$0xff]
    %v102 = vld [vmem:[#allocation6] sm:$0xff]
    %v103 = vld [vmem:[#allocation6 + $0x8] sm:$0xff]
    %v104 = vld [vmem:[#allocation6 + $0x10] sm:$0xff]
    %v105 = vld [vmem:[#allocation6 + $0x18] sm:$0xff]
    %v106 = vld [vmem:[#allocation6 + $0x20] sm:$0xff]
    %v107 = vld [vmem:[#allocation6 + $0x28] sm:$0xff]
    %v108 = vld [vmem:[#allocation6 + $0x30] sm:$0xff]
    %v109 = vld [vmem:[#allocation6 + $0x38] sm:$0xff]
    %v110 = vld [vmem:[%s2] sm:$0xff]
    %v111 = vld [vmem:[#allocation8] sm:$0xff]
    %v112 = vld [vmem:[#allocation8 + $0x8] sm:$0xff]
    %v113 = vld [vmem:[#allocation8 + $0x10] sm:$0xff]
    %v114 = vld [vmem:[#allocation8 + $0x18] sm:$0xff]
    %v115 = vld [vmem:[#allocation8 + $0x20] sm:$0xff]
    %v116 = vld [vmem:[#allocation8 + $0x28] sm:$0xff]
    %v117 = vld [vmem:[#allocation8 + $0x30] sm:$0xff]
    %v118 = vld [vmem:[#allocation8 + $0x38] sm:$0xff]
    %v119 = vld [vmem:[#allocation8 + $0x40] sm:$0xff]
    %v120 = vld [vmem:[#allocation8 + $0x48] sm:$0xff]
    %v121 = vld [vmem:[#allocation8 + $0x50] sm:$0xff]
    %v122 = vld [vmem:[#allocation8 + $0x58] sm:$0xff]
    %v123 = vld [vmem:[#allocation8 + $0x60] sm:$0xff]
    %v124 = vld [vmem:[#allocation8 + $0x68] sm:$0xff]
    %v125 = vld [vmem:[#allocation8 + $0x70] sm:$0xff]
    %v126 = vld [vmem:[#allocation8 + $0x78] sm:$0xff]
    %v127 = vld [vmem:[#allocation8 + $0x80] sm:$0xff]
    %v128 = vld [vmem:[#allocation8 + $0x88] sm:$0xff]
    %v129 = vld [vmem:[#allocation8 + $0x90] sm:$0xff]
    %v130 = vld [vmem:[#allocation8 + $0x98] sm:$0xff]
    %v131 = vld [vmem:[#allocation8 + $0xa0] sm:$0xff]
    %v132 = vld [vmem:[#allocation8 + $0xa8] sm:$0xff]
    %v133 = vld [vmem:[#allocation8 + $0xb0] sm:$0xff]
    %v134 = vld [vmem:[#allocation8 + $0xb8] sm:$0xff]
    %v135 = vld [vmem:[#allocation8 + $0xc0] sm:$0xff]
    %v136 = vld [vmem:[#allocation8 + $0xc8] sm:$0xff]
    %v137 = vld [vmem:[#allocation8 + $0xd0] sm:$0xff]
    %v138 = vld [vmem:[#allocation8 + $0xd8] sm:$0xff]
    %v139 = vld [vmem:[#allocation8 + $0xe0] sm:$0xff]
    %v140 = vld [vmem:[#allocation8 + $0xe8] sm:$0xff]
    %v141 = vld [vmem:[#allocation8 + $0xf0] sm:$0xff]
    %v142 = vld [vmem:[#allocation8 + $0xf8] sm:$0xff]
    %v143 = vld [vmem:[#allocation8 + $0x100] sm:$0xff]
    %v144 = vld [vmem:[#allocation8 + $0x108] sm:$0xff]
    %v145 = vld [vmem:[#allocation8 + $0x110] sm:$0xff]
    %v146 = vld [vmem:[#allocation8 + $0x118] sm:$0xff]
    %v147 = vld [vmem:[#allocation8 + $0x120] sm:$0xff]
    %v148 = vld [vmem:[#allocation8 + $0x128] sm:$0xff]
    %v149 = vld [vmem:[#allocation8 + $0x130] sm:$0xff]
    %v150 = vld [vmem:[#allocation8 + $0x138] sm:$0xff]
    %v151 = vld [vmem:[#allocation8 + $0x140] sm:$0xff]
    %v152 = vld [vmem:[#allocation8 + $0x148] sm:$0xff]
    %v153 = vld [vmem:[#allocation8 + $0x150] sm:$0xff]
    %v154 = vld [vmem:[#allocation8 + $0x158] sm:$0xff]
    %v155 = vld [vmem:[#allocation8 + $0x160] sm:$0xff]
    %v156 = vld [vmem:[#allocation8 + $0x168] sm:$0xff]
    %v157 = vld [vmem:[#allocation8 + $0x170] sm:$0xff]
    %v158 = vld [vmem:[#allocation8 + $0x178] sm:$0xff]
    %v159 = vld [vmem:[#allocation8 + $0x180] sm:$0xff]
    %v160 = vld [vmem:[#allocation8 + $0x188] sm:$0xff]
    %v161 = vld [vmem:[#allocation8 + $0x190] sm:$0xff]
    %v162 = vld [vmem:[#allocation8 + $0x198] sm:$0xff]
    %v163 = vld [vmem:[#allocation8 + $0x1a0] sm:$0xff]
    %v164 = vld [vmem:[#allocation8 + $0x1a8] sm:$0xff]
    %v165 = vld [vmem:[#allocation8 + $0x1b0] sm:$0xff]
    %v166 = vld [vmem:[#allocation8 + $0x1b8] sm:$0xff]
    %v167 = vld [vmem:[#allocation8 + $0x1c0] sm:$0xff]
    %v168 = vld [vmem:[#allocation8 + $0x1c8] sm:$0xff]
    %v169 = vld [vmem:[#allocation8 + $0x1d0] sm:$0xff]
    %v170 = vld [vmem:[#allocation8 + $0x1d8] sm:$0xff]
    %v171 = vld [vmem:[#allocation8 + $0x1e0] sm:$0xff]
    %v172 = vld [vmem:[#allocation8 + $0x1e8] sm:$0xff]
    %v173 = vld [vmem:[#allocation8 + $0x1f0] sm:$0xff]
    %v174 = vld [vmem:[#allocation8 + $0x1f8] sm:$0xff]
    %v175 = vld [vmem:[#allocation8 + $0x200] sm:$0xff]
    %v176 = vld [vmem:[#allocation8 + $0x208] sm:$0xff]
    %v177 = vld [vmem:[#allocation8 + $0x210] sm:$0xff]
    %v178 = vld [vmem:[#allocation8 + $0x218] sm:$0xff]
    %v179 = vld [vmem:[#allocation8 + $0x220] sm:$0xff]
    %v180 = vld [vmem:[#allocation8 + $0x228] sm:$0xff]
    %v181 = vld [vmem:[#allocation8 + $0x230] sm:$0xff]
    %v182 = vld [vmem:[#allocation8 + $0x238] sm:$0xff]
    %v183 = vld [vmem:[#allocation8 + $0x240] sm:$0xff]
    %v184 = vld [vmem:[#allocation8 + $0x248] sm:$0xff]
    %v185 = vld [vmem:[#allocation8 + $0x250] sm:$0xff]
    %v186 = vld [vmem:[#allocation8 + $0x258] sm:$0xff]
    %v187 = vld [vmem:[#allocation8 + $0x260] sm:$0xff]
    %v188 = vld [vmem:[#allocation8 + $0x268] sm:$0xff]
    %v189 = vld [vmem:[#allocation8 + $0x270] sm:$0xff]
    %v190 = vld [vmem:[#allocation8 + $0x278] sm:$0xff]
    %v191 = vld [vmem:[#allocation8 + $0x280] sm:$0xff]
    %v192 = vld [vmem:[#allocation8 + $0x288] sm:$0xff]
    %v193 = vld [vmem:[#allocation8 + $0x290] sm:$0xff]
    %v194 = vld [vmem:[#allocation8 + $0x298] sm:$0xff]
    %v195 = vld [vmem:[#allocation8 + $0x2a0] sm:$0xff]
    %v196 = vld [vmem:[#allocation8 + $0x2a8] sm:$0xff]
    %v197 = vld [vmem:[#allocation8 + $0x2b0] sm:$0xff]
    %v198 = vld [vmem:[#allocation8 + $0x2b8] sm:$0xff]
    %v199 = vld [vmem:[#allocation8 + $0x2c0] sm:$0xff]
    %v200 = vld [vmem:[#allocation8 + $0x2c8] sm:$0xff]
    %v201 = vld [vmem:[#allocation8 + $0x2d0] sm:$0xff]
    %v202 = vld [vmem:[#allocation8 + $0x2d8] sm:$0xff]
    %v203 = vld [vmem:[#allocation8 + $0x2e0] sm:$0xff]
    %v204 = vld [vmem:[#allocation8 + $0x2e8] sm:$0xff]
    %v205 = vld [vmem:[#allocation8 + $0x2f0] sm:$0xff]
    %v206 = vld [vmem:[#allocation8 + $0x2f8] sm:$0xff]
    %v207 = vld [vmem:[#allocation8 + $0x300] sm:$0xff]
    %v208 = vld [vmem:[#allocation8 + $0x308] sm:$0xff]
    %v209 = vld [vmem:[#allocation8 + $0x310] sm:$0xff]
    %v210 = vld [vmem:[#allocation8 + $0x318] sm:$0xff]
    %v211 = vld [vmem:[#allocation8 + $0x320] sm:$0xff]
    %v212 = vld [vmem:[#allocation8 + $0x328] sm:$0xff]
    %v213 = vld [vmem:[#allocation8 + $0x330] sm:$0xff]
    %v214 = vld [vmem:[#allocation8 + $0x338] sm:$0xff]
    %v215 = vld [vmem:[#allocation8 + $0x340] sm:$0xff]
    %v216 = vld [vmem:[#allocation8 + $0x348] sm:$0xff]
    %v217 = vld [vmem:[#allocation8 + $0x350] sm:$0xff]
    %v218 = vld [vmem:[#allocation8 + $0x358] sm:$0xff]
    %v219 = vld [vmem:[#allocation8 + $0x360] sm:$0xff]
    %v220 = vld [vmem:[#allocation8 + $0x368] sm:$0xff]
    %v221 = vld [vmem:[#allocation8 + $0x370] sm:$0xff]
    %v222 = vld [vmem:[#allocation8 + $0x378] sm:$0xff]
    %v223 = vld [vmem:[#allocation8 + $0x380] sm:$0xff]
    %v224 = vld [vmem:[#allocation8 + $0x388] sm:$0xff]
    %v225 = vld [vmem:[#allocation8 + $0x390] sm:$0xff]
    %v226 = vld [vmem:[#allocation8 + $0x398] sm:$0xff]
    %v227 = vld [vmem:[#allocation8 + $0x3a0] sm:$0xff]
    %v228 = vld [vmem:[#allocation8 + $0x3a8] sm:$0xff]
    %v229 = vld [vmem:[#allocation8 + $0x3b0] sm:$0xff]
    %v230 = vld [vmem:[#allocation8 + $0x3b8] sm:$0xff]
    %v231 = vld [vmem:[#allocation8 + $0x3c0] sm:$0xff]
    %v232 = vld [vmem:[#allocation8 + $0x3c8] sm:$0xff]
    %v233 = vld [vmem:[#allocation8 + $0x3d0] sm:$0xff]
    %v234 = vld [vmem:[#allocation8 + $0x3d8] sm:$0xff]
    %v235 = vld [vmem:[#allocation8 + $0x3e0] sm:$0xff]
    %v236 = vld [vmem:[#allocation8 + $0x3e8] sm:$0xff]
    %v237 = vld [vmem:[#allocation8 + $0x3f0] sm:$0xff]
    %v238 = vld [vmem:[#allocation8 + $0x3f8] sm:$0xff]
    %v239 = vld [vmem:[%s4] sm:$0x1]
    %v240 = vld [vmem:[%s5] sm:$0x1]
    %v241 = vld [vmem:[#allocation9] sm:$0xff]
    %v242 = vld [vmem:[#allocation9 + $0x8] sm:$0xff]
    %v243 = vld [vmem:[#allocation9 + $0x10] sm:$0xff]
    %v244 = vld [vmem:[#allocation9 + $0x18] sm:$0xff]
    %v245 = vld [vmem:[#allocation9 + $0x20] sm:$0xff]
    %v246 = vld [vmem:[#allocation9 + $0x28] sm:$0xff]
    %v247 = vld [vmem:[#allocation9 + $0x30] sm:$0xff]
    %v248 = vld [vmem:[#allocation9 + $0x38] sm:$0xff]
    %v249 = vld [vmem:[#allocation9 + $0x40] sm:$0xff]
    %v250 = vld [vmem:[#allocation9 + $0x48] sm:$0xff]
    %v251 = vld [vmem:[#allocation9 + $0x50] sm:$0xff]
    %v252 = vld [vmem:[#allocation9 + $0x58] sm:$0xff]
    %v253 = vld [vmem:[#allocation9 + $0x60] sm:$0xff]
    %v254 = vld [vmem:[#allocation9 + $0x68] sm:$0xff]
    %v255 = vld [vmem:[#allocation9 + $0x70] sm:$0xff]
    %v256 = vld [vmem:[#allocation9 + $0x78] sm:$0xff]
    %s257 = sld [smem:[#allocation2]]
    %v259 = vperm.slane %v239, 0
    %269 = vst [vmem:[#allocation1] ss:$4 sm:$0xff] %v94
    %s270 = scalar_lea.vmem [#allocation1], 1
    %271 = vst [vmem:[%s270] ss:$4 sm:$0xff] %v96
    %s272 = scalar_lea.vmem [#allocation1], 2
    %273 = vst [vmem:[%s272] ss:$4 sm:$0xff] %v98
    %s274 = scalar_lea.vmem [#allocation1], 3
    %275 = vst [vmem:[%s274] ss:$4 sm:$0xff] %v100
    %s276 = scalar_lea.vmem [#allocation1], 32
    %277 = vst [vmem:[%s276] ss:$4 sm:$0xff] %v95
    %s278 = scalar_lea.vmem [#allocation1], 33
    %279 = vst [vmem:[%s278] ss:$4 sm:$0xff] %v97
    %s280 = scalar_lea.vmem [#allocation1], 34
    %281 = vst [vmem:[%s280] ss:$4 sm:$0xff] %v99
    %s282 = scalar_lea.vmem [#allocation1], 35
    %283 = vst [vmem:[%s282] ss:$4 sm:$0xff] %v101
    %v284 = vld.sshfl [vmem:[#allocation1] sm:$0xff pattern:$0x73625140]
    %v285 = vld.sshfl [vmem:[#allocation1 + $0x8] sm:$0xff pattern:$0x73625140]
    %v286 = vld.sshfl [vmem:[#allocation1 + $0x10] sm:$0xff pattern:$0x73625140]
    %v287 = vld.sshfl [vmem:[#allocation1 + $0x18] sm:$0xff pattern:$0x73625140]
    %v288 = vld.sshfl [vmem:[#allocation1 + $0x20] sm:$0xff pattern:$0x73625140]
    %v289 = vld.sshfl [vmem:[#allocation1 + $0x28] sm:$0xff pattern:$0x73625140]
    %v290 = vld.sshfl [vmem:[#allocation1 + $0x30] sm:$0xff pattern:$0x73625140]
    %v291 = vld.sshfl [vmem:[#allocation1 + $0x38] sm:$0xff pattern:$0x73625140]
    %300 = vmatpush.msra.mxu0 %v126
    %301 = vmatpush.msra.mxu0 %v125
    %302 = vmatpush.msra.mxu0 %v124
    %303 = vmatpush.msra.mxu0 %v123
    %304 = vmatpush.msra.mxu0 %v122
    %305 = vmatpush.msra.mxu0 %v121
    %306 = vmatpush.msra.mxu0 %v120
    %307 = vmatpush.msra.mxu0 %v119
    %308 = vmatpush.msra.mxu0 %v118
    %309 = vmatpush.msra.mxu0 %v117
    %310 = vmatpush.msra.mxu0 %v116
    %311 = vmatpush.msra.mxu0 %v115
    %312 = vmatpush.msra.mxu0 %v114
    %313 = vmatpush.msra.mxu0 %v113
    %314 = vmatpush.msra.mxu0 %v112
    %315 = vmatpush.msra.mxu0 %v111
    %316 = vmatmul.f32.gmra.mxu0 %v284
    %v317 = vpop.f32.mrf.mxu0
    %v318 = vadd.f32 %v259, %v317
    %319 = vdwg.mxu0
    %320 = vmatpush.msra.mxu0 %v142
    %321 = vmatpush.msra.mxu0 %v141
    %322 = vmatpush.msra.mxu0 %v140
    %323 = vmatpush.msra.mxu0 %v139
    %324 = vmatpush.msra.mxu0 %v138
    %325 = vmatpush.msra.mxu0 %v137
    %326 = vmatpush.msra.mxu0 %v136
    %327 = vmatpush.msra.mxu0 %v135
    %328 = vmatpush.msra.mxu0 %v134
    %329 = vmatpush.msra.mxu0 %v133
    %330 = vmatpush.msra.mxu0 %v132
    %331 = vmatpush.msra.mxu0 %v131
    %332 = vmatpush.msra.mxu0 %v130
    %333 = vmatpush.msra.mxu0 %v129
    %334 = vmatpush.msra.mxu0 %v128
    %335 = vmatpush.msra.mxu0 %v127
    %336 = vmatmul.f32.gmra.mxu0 %v285
    %v337 = vpop.f32.mrf.mxu0
    %v338 = vadd.f32 %v318, %v337
    %339 = vdwg.mxu0
    %340 = vmatpush.msra.mxu0 %v158
    %341 = vmatpush.msra.mxu0 %v157
    %342 = vmatpush.msra.mxu0 %v156
    %343 = vmatpush.msra.mxu0 %v155
    %344 = vmatpush.msra.mxu0 %v154
    %345 = vmatpush.msra.mxu0 %v153
    %346 = vmatpush.msra.mxu0 %v152
    %347 = vmatpush.msra.mxu0 %v151
    %348 = vmatpush.msra.mxu0 %v150
    %349 = vmatpush.msra.mxu0 %v149
    %350 = vmatpush.msra.mxu0 %v148
    %351 = vmatpush.msra.mxu0 %v147
    %352 = vmatpush.msra.mxu0 %v146
    %353 = vmatpush.msra.mxu0 %v145
    %354 = vmatpush.msra.mxu0 %v144
    %355 = vmatpush.msra.mxu0 %v143
    %356 = vmatmul.f32.gmra.mxu0 %v286
    %v357 = vpop.f32.mrf.mxu0
    %v358 = vadd.f32 %v338, %v357
    %359 = vdwg.mxu0
    %360 = vmatpush.msra.mxu0 %v174
    %361 = vmatpush.msra.mxu0 %v173
    %362 = vmatpush.msra.mxu0 %v172
    %363 = vmatpush.msra.mxu0 %v171
    %364 = vmatpush.msra.mxu0 %v170
    %365 = vmatpush.msra.mxu0 %v169
    %366 = vmatpush.msra.mxu0 %v168
    %367 = vmatpush.msra.mxu0 %v167
    %368 = vmatpush.msra.mxu0 %v166
    %369 = vmatpush.msra.mxu0 %v165
    %370 = vmatpush.msra.mxu0 %v164
    %371 = vmatpush.msra.mxu0 %v163
    %372 = vmatpush.msra.mxu0 %v162
    %373 = vmatpush.msra.mxu0 %v161
    %374 = vmatpush.msra.mxu0 %v160
    %375 = vmatpush.msra.mxu0 %v159
    %376 = vmatmul.f32.gmra.mxu0 %v287
    %v377 = vpop.f32.mrf.mxu0
    %v378 = vadd.f32 %v358, %v377
    %379 = vdwg.mxu0
    %380 = vmatpush.msra.mxu0 %v190
    %381 = vmatpush.msra.mxu0 %v189
    %382 = vmatpush.msra.mxu0 %v188
    %383 = vmatpush.msra.mxu0 %v187
    %384 = vmatpush.msra.mxu0 %v186
    %385 = vmatpush.msra.mxu0 %v185
    %386 = vmatpush.msra.mxu0 %v184
    %387 = vmatpush.msra.mxu0 %v183
    %388 = vmatpush.msra.mxu0 %v182
    %389 = vmatpush.msra.mxu0 %v181
    %390 = vmatpush.msra.mxu0 %v180
    %391 = vmatpush.msra.mxu0 %v179
    %392 = vmatpush.msra.mxu0 %v178
    %393 = vmatpush.msra.mxu0 %v177
    %394 = vmatpush.msra.mxu0 %v176
    %395 = vmatpush.msra.mxu0 %v175
    %396 = vmatmul.f32.gmra.mxu0 %v288
    %v397 = vpop.f32.mrf.mxu0
    %v398 = vadd.f32 %v378, %v397
    %399 = vdwg.mxu0
    %400 = vmatpush.msra.mxu0 %v206
    %401 = vmatpush.msra.mxu0 %v205
    %402 = vmatpush.msra.mxu0 %v204
    %403 = vmatpush.msra.mxu0 %v203
    %404 = vmatpush.msra.mxu0 %v202
    %405 = vmatpush.msra.mxu0 %v201
    %406 = vmatpush.msra.mxu0 %v200
    %407 = vmatpush.msra.mxu0 %v199
    %408 = vmatpush.msra.mxu0 %v198
    %409 = vmatpush.msra.mxu0 %v197
    %410 = vmatpush.msra.mxu0 %v196
    %411 = vmatpush.msra.mxu0 %v195
    %412 = vmatpush.msra.mxu0 %v194
    %413 = vmatpush.msra.mxu0 %v193
    %414 = vmatpush.msra.mxu0 %v192
    %415 = vmatpush.msra.mxu0 %v191
    %416 = vmatmul.f32.gmra.mxu0 %v289
    %v417 = vpop.f32.mrf.mxu0
    %v418 = vadd.f32 %v398, %v417
    %419 = vdwg.mxu0
    %420 = vmatpush.msra.mxu0 %v222
    %421 = vmatpush.msra.mxu0 %v221
    %422 = vmatpush.msra.mxu0 %v220
    %423 = vmatpush.msra.mxu0 %v219
    %424 = vmatpush.msra.mxu0 %v218
    %425 = vmatpush.msra.mxu0 %v217
    %426 = vmatpush.msra.mxu0 %v216
    %427 = vmatpush.msra.mxu0 %v215
    %428 = vmatpush.msra.mxu0 %v214
    %429 = vmatpush.msra.mxu0 %v213
    %430 = vmatpush.msra.mxu0 %v212
    %431 = vmatpush.msra.mxu0 %v211
    %432 = vmatpush.msra.mxu0 %v210
    %433 = vmatpush.msra.mxu0 %v209
    %434 = vmatpush.msra.mxu0 %v208
    %435 = vmatpush.msra.mxu0 %v207
    %436 = vmatmul.f32.gmra.mxu0 %v290
    %v437 = vpop.f32.mrf.mxu0
    %v438 = vadd.f32 %v418, %v437
    %439 = vdwg.mxu0
    %440 = vmatpush.msra.mxu0 %v238
    %441 = vmatpush.msra.mxu0 %v237
    %442 = vmatpush.msra.mxu0 %v236
    %443 = vmatpush.msra.mxu0 %v235
    %444 = vmatpush.msra.mxu0 %v234
    %445 = vmatpush.msra.mxu0 %v233
    %446 = vmatpush.msra.mxu0 %v232
    %447 = vmatpush.msra.mxu0 %v231
    %448 = vmatpush.msra.mxu0 %v230
    %449 = vmatpush.msra.mxu0 %v229
    %450 = vmatpush.msra.mxu0 %v228
    %451 = vmatpush.msra.mxu0 %v227
    %452 = vmatpush.msra.mxu0 %v226
    %453 = vmatpush.msra.mxu0 %v225
    %454 = vmatpush.msra.mxu0 %v224
    %455 = vmatpush.msra.mxu0 %v223
    %456 = vmatmul.f32.gmra.mxu0 %v291
    %v457 = vpop.f32.mrf.mxu0
    %v458 = vadd.f32 %v438, %v457
    %459 = vdwg.mxu0
    %468 = vst [vmem:[#allocation1] ss:$4 sm:$0xff] %v102
    %s469 = scalar_lea.vmem [#allocation1], 1
    %470 = vst [vmem:[%s469] ss:$4 sm:$0xff] %v104
    %s471 = scalar_lea.vmem [#allocation1], 2
    %472 = vst [vmem:[%s471] ss:$4 sm:$0xff] %v106
    %s473 = scalar_lea.vmem [#allocation1], 3
    %474 = vst [vmem:[%s473] ss:$4 sm:$0xff] %v108
    %s475 = scalar_lea.vmem [#allocation1], 32
    %476 = vst [vmem:[%s475] ss:$4 sm:$0xff] %v103
    %s477 = scalar_lea.vmem [#allocation1], 33
    %478 = vst [vmem:[%s477] ss:$4 sm:$0xff] %v105
    %s479 = scalar_lea.vmem [#allocation1], 34
    %480 = vst [vmem:[%s479] ss:$4 sm:$0xff] %v107
    %s481 = scalar_lea.vmem [#allocation1], 35
    %482 = vst [vmem:[%s481] ss:$4 sm:$0xff] %v109
    %v483 = vld.sshfl [vmem:[#allocation1] sm:$0xff pattern:$0x73625140]
    %v484 = vld.sshfl [vmem:[#allocation1 + $0x8] sm:$0xff pattern:$0x73625140]
    %v485 = vld.sshfl [vmem:[#allocation1 + $0x10] sm:$0xff pattern:$0x73625140]
    %v486 = vld.sshfl [vmem:[#allocation1 + $0x18] sm:$0xff pattern:$0x73625140]
    %v487 = vld.sshfl [vmem:[#allocation1 + $0x20] sm:$0xff pattern:$0x73625140]
    %v488 = vld.sshfl [vmem:[#allocation1 + $0x28] sm:$0xff pattern:$0x73625140]
    %v489 = vld.sshfl [vmem:[#allocation1 + $0x30] sm:$0xff pattern:$0x73625140]
    %v490 = vld.sshfl [vmem:[#allocation1 + $0x38] sm:$0xff pattern:$0x73625140]
    %499 = vmatpush.msra.mxu0 %v126
    %500 = vmatpush.msra.mxu0 %v125
    %501 = vmatpush.msra.mxu0 %v124
    %502 = vmatpush.msra.mxu0 %v123
    %503 = vmatpush.msra.mxu0 %v122
    %504 = vmatpush.msra.mxu0 %v121
    %505 = vmatpush.msra.mxu0 %v120
    %506 = vmatpush.msra.mxu0 %v119
    %507 = vmatpush.msra.mxu0 %v118
    %508 = vmatpush.msra.mxu0 %v117
    %509 = vmatpush.msra.mxu0 %v116
    %510 = vmatpush.msra.mxu0 %v115
    %511 = vmatpush.msra.mxu0 %v114
    %512 = vmatpush.msra.mxu0 %v113
    %513 = vmatpush.msra.mxu0 %v112
    %514 = vmatpush.msra.mxu0 %v111
    %515 = vmatmul.f32.gmra.mxu0 %v483
    %v516 = vpop.f32.mrf.mxu0
    %v517 = vadd.f32 %v259, %v516
    %518 = vdwg.mxu0
    %519 = vmatpush.msra.mxu0 %v142
    %520 = vmatpush.msra.mxu0 %v141
    %521 = vmatpush.msra.mxu0 %v140
    %522 = vmatpush.msra.mxu0 %v139
    %523 = vmatpush.msra.mxu0 %v138
    %524 = vmatpush.msra.mxu0 %v137
    %525 = vmatpush.msra.mxu0 %v136
    %526 = vmatpush.msra.mxu0 %v135
    %527 = vmatpush.msra.mxu0 %v134
    %528 = vmatpush.msra.mxu0 %v133
    %529 = vmatpush.msra.mxu0 %v132
    %530 = vmatpush.msra.mxu0 %v131
    %531 = vmatpush.msra.mxu0 %v130
    %532 = vmatpush.msra.mxu0 %v129
    %533 = vmatpush.msra.mxu0 %v128
    %534 = vmatpush.msra.mxu0 %v127
    %535 = vmatmul.f32.gmra.mxu0 %v484
    %v536 = vpop.f32.mrf.mxu0
    %v537 = vadd.f32 %v517, %v536
    %538 = vdwg.mxu0
    %539 = vmatpush.msra.mxu0 %v158
    %540 = vmatpush.msra.mxu0 %v157
    %541 = vmatpush.msra.mxu0 %v156
    %542 = vmatpush.msra.mxu0 %v155
    %543 = vmatpush.msra.mxu0 %v154
    %544 = vmatpush.msra.mxu0 %v153
    %545 = vmatpush.msra.mxu0 %v152
    %546 = vmatpush.msra.mxu0 %v151
    %547 = vmatpush.msra.mxu0 %v150
    %548 = vmatpush.msra.mxu0 %v149
    %549 = vmatpush.msra.mxu0 %v148
    %550 = vmatpush.msra.mxu0 %v147
    %551 = vmatpush.msra.mxu0 %v146
    %552 = vmatpush.msra.mxu0 %v145
    %553 = vmatpush.msra.mxu0 %v144
    %554 = vmatpush.msra.mxu0 %v143
    %555 = vmatmul.f32.gmra.mxu0 %v485
    %v556 = vpop.f32.mrf.mxu0
    %v557 = vadd.f32 %v537, %v556
    %558 = vdwg.mxu0
    %559 = vmatpush.msra.mxu0 %v174
    %560 = vmatpush.msra.mxu0 %v173
    %561 = vmatpush.msra.mxu0 %v172
    %562 = vmatpush.msra.mxu0 %v171
    %563 = vmatpush.msra.mxu0 %v170
    %564 = vmatpush.msra.mxu0 %v169
    %565 = vmatpush.msra.mxu0 %v168
    %566 = vmatpush.msra.mxu0 %v167
    %567 = vmatpush.msra.mxu0 %v166
    %568 = vmatpush.msra.mxu0 %v165
    %569 = vmatpush.msra.mxu0 %v164
    %570 = vmatpush.msra.mxu0 %v163
    %571 = vmatpush.msra.mxu0 %v162
    %572 = vmatpush.msra.mxu0 %v161
    %573 = vmatpush.msra.mxu0 %v160
    %574 = vmatpush.msra.mxu0 %v159
    %575 = vmatmul.f32.gmra.mxu0 %v486
    %v576 = vpop.f32.mrf.mxu0
    %v577 = vadd.f32 %v557, %v576
    %578 = vdwg.mxu0
    %579 = vmatpush.msra.mxu0 %v190
    %580 = vmatpush.msra.mxu0 %v189
    %581 = vmatpush.msra.mxu0 %v188
    %582 = vmatpush.msra.mxu0 %v187
    %583 = vmatpush.msra.mxu0 %v186
    %584 = vmatpush.msra.mxu0 %v185
    %585 = vmatpush.msra.mxu0 %v184
    %586 = vmatpush.msra.mxu0 %v183
    %587 = vmatpush.msra.mxu0 %v182
    %588 = vmatpush.msra.mxu0 %v181
    %589 = vmatpush.msra.mxu0 %v180
    %590 = vmatpush.msra.mxu0 %v179
    %591 = vmatpush.msra.mxu0 %v178
    %592 = vmatpush.msra.mxu0 %v177
    %593 = vmatpush.msra.mxu0 %v176
    %594 = vmatpush.msra.mxu0 %v175
    %595 = vmatmul.f32.gmra.mxu0 %v487
    %v596 = vpop.f32.mrf.mxu0
    %v597 = vadd.f32 %v577, %v596
    %598 = vdwg.mxu0
    %599 = vmatpush.msra.mxu0 %v206
    %600 = vmatpush.msra.mxu0 %v205
    %601 = vmatpush.msra.mxu0 %v204
    %602 = vmatpush.msra.mxu0 %v203
    %603 = vmatpush.msra.mxu0 %v202
    %604 = vmatpush.msra.mxu0 %v201
    %605 = vmatpush.msra.mxu0 %v200
    %606 = vmatpush.msra.mxu0 %v199
    %607 = vmatpush.msra.mxu0 %v198
    %608 = vmatpush.msra.mxu0 %v197
    %609 = vmatpush.msra.mxu0 %v196
    %610 = vmatpush.msra.mxu0 %v195
    %611 = vmatpush.msra.mxu0 %v194
    %612 = vmatpush.msra.mxu0 %v193
    %613 = vmatpush.msra.mxu0 %v192
    %614 = vmatpush.msra.mxu0 %v191
    %615 = vmatmul.f32.gmra.mxu0 %v488
    %v616 = vpop.f32.mrf.mxu0
    %v617 = vadd.f32 %v597, %v616
    %618 = vdwg.mxu0
    %619 = vmatpush.msra.mxu0 %v222
    %620 = vmatpush.msra.mxu0 %v221
    %621 = vmatpush.msra.mxu0 %v220
    %622 = vmatpush.msra.mxu0 %v219
    %623 = vmatpush.msra.mxu0 %v218
    %624 = vmatpush.msra.mxu0 %v217
    %625 = vmatpush.msra.mxu0 %v216
    %626 = vmatpush.msra.mxu0 %v215
    %627 = vmatpush.msra.mxu0 %v214
    %628 = vmatpush.msra.mxu0 %v213
    %629 = vmatpush.msra.mxu0 %v212
    %630 = vmatpush.msra.mxu0 %v211
    %631 = vmatpush.msra.mxu0 %v210
    %632 = vmatpush.msra.mxu0 %v209
    %633 = vmatpush.msra.mxu0 %v208
    %634 = vmatpush.msra.mxu0 %v207
    %635 = vmatmul.f32.gmra.mxu0 %v489
    %v636 = vpop.f32.mrf.mxu0
    %v637 = vadd.f32 %v617, %v636
    %638 = vdwg.mxu0
    %639 = vmatpush.msra.mxu0 %v238
    %640 = vmatpush.msra.mxu0 %v237
    %641 = vmatpush.msra.mxu0 %v236
    %642 = vmatpush.msra.mxu0 %v235
    %643 = vmatpush.msra.mxu0 %v234
    %644 = vmatpush.msra.mxu0 %v233
    %645 = vmatpush.msra.mxu0 %v232
    %646 = vmatpush.msra.mxu0 %v231
    %647 = vmatpush.msra.mxu0 %v230
    %648 = vmatpush.msra.mxu0 %v229
    %649 = vmatpush.msra.mxu0 %v228
    %650 = vmatpush.msra.mxu0 %v227
    %651 = vmatpush.msra.mxu0 %v226
    %652 = vmatpush.msra.mxu0 %v225
    %653 = vmatpush.msra.mxu0 %v224
    %654 = vmatpush.msra.mxu0 %v223
    %655 = vmatmul.f32.gmra.mxu0 %v490
    %v656 = vpop.f32.mrf.mxu0
    %v657 = vadd.f32 %v637, %v656
    %658 = vdwg.mxu0
    %vm659 = vcmp.gt.f32.partialorder %v458, 0.0
    %v660 = vmul.f32 %v458, 0.2
    %v661 = vsel %vm659, %v458, %v660
    %vm662 = vcmp.gt.f32.partialorder %v657, 0.0
    %v663 = vmul.f32 %v657, 0.2
    %v664 = vsel %vm662, %v657, %v663
    %v665 = vlaneseq
    %v666 = vshrl.u32 %v665, 7
    %s667 = smul.u32 0, 8
    %v668 = vstv %s667
    %v669 = vadd.s32 %v666, %v668
    %vm670 = vcmp.lt.s32.totalorder %v669, 2
    %s671 = ssub.s32 2, %s667
    %p672 = scmp.gt.s32.totalorder %s671, 0
    %s673 = scalar_select %p672, %s671, 0
    %p674 = scmp.lt.s32.totalorder %s673, 8
    %s675 = scalar_select %p674, %s673, 8
    %s676 = scvt.s32.f32 %s675
    %v678 = vperm.slane %v240, 0
    %v680 = vmul.f32 %v661, %v678
    %v681 = vsel %vm670, 1, 0
    %vm682 = vcmp.eq.s32.totalorder %v681, 1
    %v683 = vsel %vm682, %v680, 0.0
    %684 = vadd.xlane.f32.xlu0 %v683
    %v685 = vpop.xlane.xlu0 %684
    %v686 = vrot.slane %v685, 4
    %v687 = vadd.f32 %v685, %v686
    %v688 = vrot.slane %v687, 2
    %v689 = vadd.f32 %v687, %v688
    %v690 = vrot.slane %v689, 1
    %v691 = vadd.f32 %v689, %v690
    %s692 = vtos %v691
    %s693 = smul.f32 %s257, %s676
    %s694 = sadd.f32 %s692, %s693
    %v695 = vmul.f32 %v664, %v678
    %v696 = vsel %vm682, %v695, 0.0
    %697 = vadd.xlane.f32.xlu0 %v696
    %v698 = vpop.xlane.xlu0 %697
    %v699 = vrot.slane %v698, 4
    %v700 = vadd.f32 %v698, %v699
    %v701 = vrot.slane %v700, 2
    %v702 = vadd.f32 %v700, %v701
    %v703 = vrot.slane %v702, 1
    %v704 = vadd.f32 %v702, %v703
    %s705 = vtos %v704
    %s706 = sadd.f32 %s705, %s693
    %708 = vset.pattern.permute.xlu0 0
    %709 = vperm.xlu0 %708, %v110
    %v710 = vpop.permute.xlu0 %709
    %v712 = vmul.f32 %v710, %v458
    %v713 = vsub.f32 1.0, %v110
    %715 = vset.pattern.permute.xlu0 0
    %716 = vperm.xlu0 %715, %v713
    %v717 = vpop.permute.xlu0 %716
    %v719 = vmul.f32 %v717, %v657
    %v720 = vadd.f32 %v712, %v719
    %vm721 = vcmp.gt.f32.partialorder %v720, 0.0
    %v722 = vsel %vm721, 1.0, 0.2
    %v723 = vmul.f32 %v722, %v678
    %724 = vmatpush.msra.mxu0 %v256
    %725 = vmatpush.msra.mxu0 %v255
    %726 = vmatpush.msra.mxu0 %v254
    %727 = vmatpush.msra.mxu0 %v253
    %728 = vmatpush.msra.mxu0 %v252
    %729 = vmatpush.msra.mxu0 %v251
    %730 = vmatpush.msra.mxu0 %v250
    %731 = vmatpush.msra.mxu0 %v249
    %732 = vmatpush.msra.mxu0 %v248
    %733 = vmatpush.msra.mxu0 %v247
    %734 = vmatpush.msra.mxu0 %v246
    %735 = vmatpush.msra.mxu0 %v245
    %736 = vmatpush.msra.mxu0 %v244
    %737 = vmatpush.msra.mxu0 %v243
    %738 = vmatpush.msra.mxu0 %v242
    %739 = vmatpush.msra.mxu0 %v241
    %740 = vmatmul.f32.gmra.mxu0 %v723
    %v741 = vpop.f32.mrf.mxu0
    %v742 = vadd.f32 0.0, %v741
    %743 = vdwg.mxu0
    %v744 = vmul.f32 %v742, %v723
    %745 = vadd.xlane.f32.xlu0 %v744
    %v746 = vpop.xlane.xlu0 %745
    %v747 = vmax.f32 %v746, 0.0
    %v748 = vrsqrt.pop %v747
    %v749 = vmul.f32 %v748, %v747
    %v750 = vmul.f32 %v749, %v748
    %v751 = vmul.f32 0.5, %v750
    %v752 = vsub.f32 1.5, %v751
    %v753 = vmul.f32 %v748, %v752
    %v754 = vmul.f32 %v747, %v753
    %vm755 = vcmp.eq.f32.partialorder %v747, inf
    %v756 = vsel %vm755, %v747, %v754
    %vm757 = vcmp.eq.f32.partialorder %v747, 0.0
    %v758 = vand.u32 %v747, 2147483648
    %v759 = vsel %vm757, %v758, %v756
    %v760 = vsub.f32 %v759, 1.0
    %v761 = vmul.f32 %v760, %v760
    %v762 = vsel %vm670, %v761, 0.0
    %vm763 = vcmask 7168
    %v764 = vsel %vm763, %v762, 0.0
    %765 = vadd.xlane.f32.xlu0 %v764
    %v766 = vpop.xlane.xlu0 %765
    %v767 = vrot.slane %v766, 4
    %v768 = vadd.f32 %v766, %v767
    %v769 = vrot.slane %v768, 2
    %v770 = vadd.f32 %v768, %v769
    %v771 = vrot.slane %v770, 1
    %v772 = vadd.f32 %v770, %v771
    %s773 = vtos %v772
    %v774 = vlaneseq
    %v775 = vand.u32 %v774, 127
    %vm776 = vcmp.eq.s32.totalorder %v666, 0
    %vm777 = vcmp.eq.s32.totalorder %v775, 0
    %vm778 = vmand %vm776, %vm777
    %v779 = vstv %s694
    %v780 = vsel %vm778, %v779, 0.0
    %vm781 = vcmp.eq.s32.totalorder %v775, 1
    %vm782 = vmand %vm776, %vm781
    %v783 = vstv %s706
    %v784 = vsel %vm782, %v783, %v780
    %vm785 = vcmp.eq.s32.totalorder %v775, 2
    %vm786 = vmand %vm776, %vm785
    %v787 = vstv %s773
    %v788 = vsel %vm786, %v787, %v784
    %789 = vst [vmem:[#allocation11] sm:$0xff] %v788
    // Predicated region
    $region50: #{tpu_custom_call.1} parent=1 // pred_check
      _
    $region51: #{tpu_custom_call.1} parent=1 // pred_check_branch
      %791 = sbr.rel (0) target = $region53
    $region52: #{tpu_custom_call.1} parent=1 // pred_region
      %793 = vsyncadd [#allocation5], 0
      %s795 = sshll.u32 [#allocation11], 4
      %s796 = int_to_ptr.vmem [resolvable:$true] %s795
      %s797 = sshll.u32 %s8, 4
      %s798 = int_to_ptr.hbm [resolvable:$true] %s797
      %800 = dma.vmem_to_hbm [thread:$0]  %s796, 128, %s798, [#allocation5]
    $region53: #{tpu_custom_call.1} parent=1 // pred_fallthru
      _
    // Predicated region
    $region54: #{tpu_custom_call.1} parent=1 // pred_check
      _
    $region55: #{tpu_custom_call.1} parent=1 // pred_check_branch
      %802 = sbr.rel (0) target = $region57
    $region56: #{tpu_custom_call.1} parent=1 // pred_region
      %804 = dma.done [#allocation5], 128
    $region57: #{tpu_custom_call.1} parent=1 // pred_fallthru
      _
    %805 = vsyncpa [#allocation4], 1
    %806 = vsyncpa [#allocation7], 1
    %807 = vsyncpa [#allocation10], 1
    %808 = vsyncpa [#allocation5], 1

</llo_original>
